<compile_context>
chip_gen: v6e
topology: v6e:2x2x1
jax: 0.10.0
libtpu: 0.0.40
codegen_flags: <defaults>
</compile_context>

<pallas_src>
import jax
import jax.numpy as jnp
from jax.experimental import pallas as pl
from jax.experimental.pallas import tpu as pltpu

HIDDEN_SIZE = 64     # module global hidden_size = 64
EMBED_DIM   = 32     # synthetic GloVe embedding dim
VOCAB       = 50
NUM_LAYERS  = 2
BIDIRECTIONAL = False  # module global `bidirectional = False`


# ----------------------------- Pallas kernel ------------------------------ #
def _encoder_kernel(tok_ref,                     # (T,)  int32  SMEM token ids
                    emb_ref,                     # (V, D)       VMEM embedding table
                    h0_ref,                      # (L, 1, H)    initial hidden
                    w0_ref, b0_ref,              # layer 0: (D+H, 3H), (1, 4H)
                    w1_ref, b1_ref,              # layer 1: (H+H, 3H), (1, 4H)
                    out_ref,                     # (T, H)       top-layer outputs
                    hfin_ref):                   # (L, 1, H)    final hidden
    T, H = out_ref.shape
    V, D = emb_ref.shape

    # ---- fused nn.Embedding: gather T rows from the VMEM-resident table ----
    rows = []
    for t in range(T):
        idx = jnp.clip(tok_ref[t], 0, V - 1)               # clamp: no OOB reads
        rows.append(emb_ref[pl.ds(idx, 1), :])             # (1, D) exact gather
    x_seq = jnp.concatenate(rows, axis=0)                  # (T, D)

    def run_layer(x_seq, h, w_ref, b_ref, d_in):
        w_ih_t = w_ref[:d_in, :]                           # (d_in, 3H)
        w_hh_t = w_ref[d_in:, :]                           # (H, 3H)
        b_gi   = b_ref[:, :3 * H]                          # (1, 3H) = [b_ir+b_hr | b_iz+b_hz | b_in]
        b_hn   = b_ref[:, 3 * H:]                          # (1, H)
        # Batched input-to-hidden over ALL timesteps: one MXU pass instead of T.
        gi_seq = jnp.dot(x_seq, w_ih_t,
                         preferred_element_type=jnp.float32) + b_gi    # (T, 3H)
        outs = []
        for t in range(T):          # static unroll: recurrence is inherently sequential
            gi = gi_seq[t:t + 1, :]                                    # (1, 3H)
            gh = jnp.dot(h, w_hh_t,
                         preferred_element_type=jnp.float32)           # (1, 3H)
            rz = jax.nn.sigmoid(gi[:, :2 * H] + gh[:, :2 * H])
            r = rz[:, :H]
            z = rz[:, H:]
            # PyTorch GRU: n = tanh(W_in x + b_in + r * (W_hn h + b_hn))
            n = jnp.tanh(gi[:, 2 * H:] + r * (gh[:, 2 * H:] + b_hn))
            h = (1.0 - z) * n + z * h
            outs.append(h)
        return jnp.concatenate(outs, axis=0), h            # (T, H), (1, H)

    y0, h0_fin = run_layer(x_seq, h0_ref[0], w0_ref, b0_ref, D)
    y1, h1_fin = run_layer(y0,    h0_ref[1], w1_ref, b1_ref, H)

    out_ref[...] = y1                                      # one dense (T, H) store
    hfin_ref[0] = h0_fin
    hfin_ref[1] = h1_fin
    # TODO(synk): batched (B>=8) variant and a v7x dual-TensorCore split
    # (one sequence per core) for throughput; module semantics fix batch=1.


# ------------------------------ wrappers ----------------------------------- #
_VMEM = pl.BlockSpec(memory_space=pltpu.MemorySpace.VMEM)
_SMEM = pl.BlockSpec(memory_space=pltpu.MemorySpace.SMEM)


@jax.jit
def encode_sequence(kparams, tokens, hidden0):
    """Run the whole token sequence in one grid-less pallas_call.

    tokens  : (T,) int
    hidden0 : (NUM_LAYERS, 1, H)
    returns (outputs (T, 1, H), hidden_final (NUM_LAYERS, 1, H))
    """
    T = tokens.shape[0]
    H, L = HIDDEN_SIZE, NUM_LAYERS
    out2d, hidden_final = pl.pallas_call(
        _encoder_kernel,
        out_shape=(jax.ShapeDtypeStruct((T, H), jnp.float32),
                   jax.ShapeDtypeStruct((L, 1, H), jnp.float32)),
        in_specs=[_SMEM,                 # token ids -> SMEM (scalar reads in kernel)
                  _VMEM, _VMEM,          # embedding table, initial hidden
                  _VMEM, _VMEM,          # layer 0 packed weights / biases
                  _VMEM, _VMEM],         # layer 1 packed weights / biases
        out_specs=(_VMEM, _VMEM),
    )(tokens.astype(jnp.int32), kparams["emb"], hidden0,
      kparams["w0"], kparams["b0"], kparams["w1"], kparams["b1"])
    return out2d.reshape(T, 1, H), hidden_final


def encoder_forward(kparams, token, hidden):
    """Mirrors EncoderRNN.forward(input, hidden) for a single token.

    returns (output (1, 1, H), hidden (NUM_LAYERS, 1, H)).
    bidirectional=False, so no sum of direction halves.
    """
    tokens = jnp.reshape(token, (1,)).astype(jnp.int32)
    output, hidden_out = encode_sequence(kparams, tokens, hidden)
    return output, hidden_out


# --------------------------- parameter creation ---------------------------- #
def init_params(key):
    """PyTorch-layout parameters (what nn.GRU / nn.Embedding would hold)."""
    ks = jax.random.split(key, 2 + 4 * NUM_LAYERS)
    params = {}
    params["embedding"] = jax.random.normal(ks[0], (VOCAB, EMBED_DIM), jnp.float32)
    params["hidden0"] = jnp.zeros((NUM_LAYERS, 1, HIDDEN_SIZE), jnp.float32)
    bound = 1.0 / jnp.sqrt(HIDDEN_SIZE)
    ki = 2
    for l in range(NUM_LAYERS):
        d_in = EMBED_DIM if l == 0 else HIDDEN_SIZE
        params[f"w_ih_l{l}"] = jax.random.uniform(
            ks[ki + 0], (3 * HIDDEN_SIZE, d_in), jnp.float32, -bound, bound)
        params[f"w_hh_l{l}"] = jax.random.uniform(
            ks[ki + 1], (3 * HIDDEN_SIZE, HIDDEN_SIZE), jnp.float32, -bound, bound)
        params[f"b_ih_l{l}"] = jax.random.uniform(
            ks[ki + 2], (3 * HIDDEN_SIZE,), jnp.float32, -bound, bound)
        params[f"b_hh_l{l}"] = jax.random.uniform(
            ks[ki + 3], (3 * HIDDEN_SIZE,), jnp.float32, -bound, bound)
        ki += 4
    return params


def prepare_kernel_params(params):
    """One-time host-side pack: transpose weights, stack [W_ih^T ; W_hh^T],
    precombine r|z|n input biases -> fewer, larger kernel input DMAs."""
    H = HIDDEN_SIZE
    kp = {"emb": jnp.asarray(params["embedding"], jnp.float32)}        # (V, D)
    for l in range(NUM_LAYERS):
        w_ih = params[f"w_ih_l{l}"]                                    # (3H, d_in)
        w_hh = params[f"w_hh_l{l}"]                                    # (3H, H)
        b_ih = params[f"b_ih_l{l}"]
        b_hh = params[f"b_hh_l{l}"]
        kp[f"w{l}"] = jnp.concatenate([w_ih.T, w_hh.T], axis=0).astype(jnp.float32)
        b_gi = jnp.concatenate([b_ih[:2 * H] + b_hh[:2 * H], b_ih[2 * H:]])   # (3H,)
        kp[f"b{l}"] = jnp.concatenate([b_gi, b_hh[2 * H:]]).reshape(1, 4 * H).astype(jnp.float32)
    return kp


# --------------------------- pure-JAX reference ---------------------------- #
def _gru_cell_ref(x, h, w_ih, w_hh, b_ih, b_hh):
    H = h.shape[1]
    gi = x @ w_ih.T + b_ih
    gh = h @ w_hh.T + b_hh
    r = jax.nn.sigmoid(gi[:, :H] + gh[:, :H])
    z = jax.nn.sigmoid(gi[:, H:2 * H] + gh[:, H:2 * H])
    n = jnp.tanh(gi[:, 2 * H:] + r * gh[:, 2 * H:])
    return (1.0 - z) * n + z * h


def encoder_sequence_ref(params, tokens, hidden):
    outs = []
    for s in range(tokens.shape[0]):
        x = params["embedding"][tokens[s]].reshape(1, -1)
        new_hidden = []
        for l in range(NUM_LAYERS):
            h_new = _gru_cell_ref(x, hidden[l],
                                  params[f"w_ih_l{l}"], params[f"w_hh_l{l}"],
                                  params[f"b_ih_l{l}"], params[f"b_hh_l{l}"])
            new_hidden.append(h_new)
            x = h_new
        hidden = jnp.stack(new_hidden, axis=0)
        outs.append(x.reshape(1, 1, HIDDEN_SIZE))
    return jnp.concatenate(outs, axis=0), hidden


# ---------------------------------- main ----------------------------------- #
if __name__ == "__main__":
    key = jax.random.PRNGKey(0)
    pkey, tkey, hkey = jax.random.split(key, 3)
    params = init_params(pkey)
    kparams = prepare_kernel_params(params)

    T = 8
    tokens = jax.random.randint(tkey, (T,), 0, VOCAB, dtype=jnp.int32)
    # Non-trivial initial hidden to exercise the carry path (module's learnable
    # hidden0 is zeros; forward accepts any hidden).
    hidden = 0.1 * jax.random.normal(hkey, (NUM_LAYERS, 1, HIDDEN_SIZE), jnp.float32)

    # whole-sequence fused kernel (one pallas_call for all T timesteps)
    outputs, hidden_final = encode_sequence(kparams, tokens, hidden)
    outputs = jax.block_until_ready(outputs)
    hidden_final = jax.block_until_ready(hidden_final)

    # single-step, module-equivalent API (EncoderRNN.forward)
    out1, hid1 = encoder_forward(kparams, tokens[0], hidden)
    out1 = jax.block_until_ready(out1)

    # correctness checks against a pure-JAX reference
    out_ref_seq, hid_ref = encoder_sequence_ref(params, tokens, hidden)
    out1_ref, hid1_ref = encoder_sequence_ref(params, tokens[:1], hidden)

    assert outputs.shape == (T, 1, HIDDEN_SIZE)
    assert hidden_final.shape == (NUM_LAYERS, 1, HIDDEN_SIZE)
    assert jnp.allclose(outputs, out_ref_seq, atol=3e-5)
    assert jnp.allclose(hidden_final, hid_ref, atol=3e-5)
    assert jnp.allclose(out1, out1_ref, atol=3e-5)
    assert jnp.allclose(hid1, hid1_ref, atol=3e-5)

    print("KERNEL_OK")
</pallas_src>

<mosaic_0001>
module attributes {stable_mosaic.version = 11 : i64} {
  func.func @_encoder_kernel(%arg0: memref<8xi32, #tpu.memory_space<smem>>, %arg1: memref<50x32xf32, #tpu.memory_space<vmem>>, %arg2: memref<2x1x64xf32, #tpu.memory_space<vmem>>, %arg3: memref<96x192xf32, #tpu.memory_space<vmem>>, %arg4: memref<1x256xf32, #tpu.memory_space<vmem>>, %arg5: memref<128x192xf32, #tpu.memory_space<vmem>>, %arg6: memref<1x256xf32, #tpu.memory_space<vmem>>, %arg7: memref<8x64xf32, #tpu.memory_space<vmem>>, %arg8: memref<2x1x64xf32, #tpu.memory_space<vmem>>) attributes {dimension_semantics = [], scalar_prefetch = 0 : i64, scratch_operands = 0 : i64, tpu.core_type = #tpu.core_type<tc>} {
    %c0 = arith.constant 0 : index
    %0 = memref.load %arg0[%c0] : memref<8xi32, #tpu.memory_space<smem>>
    %c0_i32 = arith.constant 0 : i32
    %c49_i32 = arith.constant 49 : i32
    %1 = arith.maxsi %c0_i32, %0 : i32
    %2 = arith.minsi %c49_i32, %1 : i32
    %3 = arith.index_cast %2 : i32 to index
    %c0_0 = arith.constant 0 : index
    %4 = vector.load %arg1[%3, %c0_0] : memref<50x32xf32, #tpu.memory_space<vmem>>, vector<1x32xf32>
    %c1 = arith.constant 1 : index
    %5 = memref.load %arg0[%c1] : memref<8xi32, #tpu.memory_space<smem>>
    %c0_i32_1 = arith.constant 0 : i32
    %c49_i32_2 = arith.constant 49 : i32
    %6 = arith.maxsi %c0_i32_1, %5 : i32
    %7 = arith.minsi %c49_i32_2, %6 : i32
    %8 = arith.index_cast %7 : i32 to index
    %c0_3 = arith.constant 0 : index
    %9 = vector.load %arg1[%8, %c0_3] : memref<50x32xf32, #tpu.memory_space<vmem>>, vector<1x32xf32>
    %c2 = arith.constant 2 : index
    %10 = memref.load %arg0[%c2] : memref<8xi32, #tpu.memory_space<smem>>
    %c0_i32_4 = arith.constant 0 : i32
    %c49_i32_5 = arith.constant 49 : i32
    %11 = arith.maxsi %c0_i32_4, %10 : i32
    %12 = arith.minsi %c49_i32_5, %11 : i32
    %13 = arith.index_cast %12 : i32 to index
    %c0_6 = arith.constant 0 : index
    %14 = vector.load %arg1[%13, %c0_6] : memref<50x32xf32, #tpu.memory_space<vmem>>, vector<1x32xf32>
    %c3 = arith.constant 3 : index
    %15 = memref.load %arg0[%c3] : memref<8xi32, #tpu.memory_space<smem>>
    %c0_i32_7 = arith.constant 0 : i32
    %c49_i32_8 = arith.constant 49 : i32
    %16 = arith.maxsi %c0_i32_7, %15 : i32
    %17 = arith.minsi %c49_i32_8, %16 : i32
    %18 = arith.index_cast %17 : i32 to index
    %c0_9 = arith.constant 0 : index
    %19 = vector.load %arg1[%18, %c0_9] : memref<50x32xf32, #tpu.memory_space<vmem>>, vector<1x32xf32>
    %c4 = arith.constant 4 : index
    %20 = memref.load %arg0[%c4] : memref<8xi32, #tpu.memory_space<smem>>
    %c0_i32_10 = arith.constant 0 : i32
    %c49_i32_11 = arith.constant 49 : i32
    %21 = arith.maxsi %c0_i32_10, %20 : i32
    %22 = arith.minsi %c49_i32_11, %21 : i32
    %23 = arith.index_cast %22 : i32 to index
    %c0_12 = arith.constant 0 : index
    %24 = vector.load %arg1[%23, %c0_12] : memref<50x32xf32, #tpu.memory_space<vmem>>, vector<1x32xf32>
    %c5 = arith.constant 5 : index
    %25 = memref.load %arg0[%c5] : memref<8xi32, #tpu.memory_space<smem>>
    %c0_i32_13 = arith.constant 0 : i32
    %c49_i32_14 = arith.constant 49 : i32
    %26 = arith.maxsi %c0_i32_13, %25 : i32
    %27 = arith.minsi %c49_i32_14, %26 : i32
    %28 = arith.index_cast %27 : i32 to index
    %c0_15 = arith.constant 0 : index
    %29 = vector.load %arg1[%28, %c0_15] : memref<50x32xf32, #tpu.memory_space<vmem>>, vector<1x32xf32>
    %c6 = arith.constant 6 : index
    %30 = memref.load %arg0[%c6] : memref<8xi32, #tpu.memory_space<smem>>
    %c0_i32_16 = arith.constant 0 : i32
    %c49_i32_17 = arith.constant 49 : i32
    %31 = arith.maxsi %c0_i32_16, %30 : i32
    %32 = arith.minsi %c49_i32_17, %31 : i32
    %33 = arith.index_cast %32 : i32 to index
    %c0_18 = arith.constant 0 : index
    %34 = vector.load %arg1[%33, %c0_18] : memref<50x32xf32, #tpu.memory_space<vmem>>, vector<1x32xf32>
    %c7 = arith.constant 7 : index
    %35 = memref.load %arg0[%c7] : memref<8xi32, #tpu.memory_space<smem>>
    %c0_i32_19 = arith.constant 0 : i32
    %c49_i32_20 = arith.constant 49 : i32
    %36 = arith.maxsi %c0_i32_19, %35 : i32
    %37 = arith.minsi %c49_i32_20, %36 : i32
    %38 = arith.index_cast %37 : i32 to index
    %c0_21 = arith.constant 0 : index
    %39 = vector.load %arg1[%38, %c0_21] : memref<50x32xf32, #tpu.memory_space<vmem>>, vector<1x32xf32>
    %40 = tpu.concatenate %4, %9, %14, %19, %24, %29, %34, %39 in 0 : vector<1x32xf32>, vector<1x32xf32>, vector<1x32xf32>, vector<1x32xf32>, vector<1x32xf32>, vector<1x32xf32>, vector<1x32xf32>, vector<1x32xf32> -> vector<8x32xf32>
    %c0_22 = arith.constant 0 : index
    %c0_23 = arith.constant 0 : index
    %c0_24 = arith.constant 0 : index
    %41 = vector.load %arg2[%c0_22, %c0_23, %c0_24] : memref<2x1x64xf32, #tpu.memory_space<vmem>>, vector<1x1x64xf32>
    %42 = vector.shape_cast %41 : vector<1x1x64xf32> to vector<1x64xf32>
    %c0_25 = arith.constant 0 : index
    %c0_26 = arith.constant 0 : index
    %43 = vector.load %arg3[%c0_25, %c0_26] : memref<96x192xf32, #tpu.memory_space<vmem>>, vector<32x192xf32>
    %c32 = arith.constant 32 : index
    %c0_27 = arith.constant 0 : index
    %44 = vector.load %arg3[%c32, %c0_27] : memref<96x192xf32, #tpu.memory_space<vmem>>, vector<64x192xf32>
    %c0_28 = arith.constant 0 : index
    %c0_29 = arith.constant 0 : index
    %45 = vector.load %arg4[%c0_28, %c0_29] : memref<1x256xf32, #tpu.memory_space<vmem>>, vector<1x192xf32>
    %c0_30 = arith.constant 0 : index
    %c192 = arith.constant 192 : index
    %46 = vector.load %arg4[%c0_30, %c192] : memref<1x256xf32, #tpu.memory_space<vmem>>, vector<1x64xf32>
    %cst = arith.constant dense<0.000000e+00> : vector<8x192xf32>
    %47 = tpu.matmul %40, %43, %cst {dimension_numbers = #tpu.dot_dimension_numbers<[1], [0], [0], [1], [0, 0, 1, 1], [], []>} : vector<8x32xf32>, vector<32x192xf32>, vector<8x192xf32> -> vector<8x192xf32>
    %48 = vector.broadcast %45 : vector<1x192xf32> to vector<8x192xf32>
    %49 = arith.addf %47, %48 : vector<8x192xf32>
    %50 = vector.extract_strided_slice %49 {offsets = [0, 0], sizes = [1, 192], strides = [1, 1]} : vector<8x192xf32> to vector<1x192xf32>
    %cst_31 = arith.constant dense<0.000000e+00> : vector<1x192xf32>
    %51 = tpu.matmul %42, %44, %cst_31 {dimension_numbers = #tpu.dot_dimension_numbers<[1], [0], [0], [1], [0, 0, 1, 1], [], []>} : vector<1x64xf32>, vector<64x192xf32>, vector<1x192xf32> -> vector<1x192xf32>
    %52 = vector.extract_strided_slice %50 {offsets = [0, 0], sizes = [1, 128], strides = [1, 1]} : vector<1x192xf32> to vector<1x128xf32>
    %53 = vector.extract_strided_slice %51 {offsets = [0, 0], sizes = [1, 128], strides = [1, 1]} : vector<1x192xf32> to vector<1x128xf32>
    %54 = arith.addf %52, %53 : vector<1x128xf32>
    %55 = arith.negf %54 : vector<1x128xf32>
    %56 = math.exp %55 : vector<1x128xf32>
    %cst_32 = arith.constant 1.000000e+00 : f32
    %57 = vector.broadcast %cst_32 : f32 to vector<1x128xf32>
    %58 = arith.addf %57, %56 : vector<1x128xf32>
    %59 = arith.divf %57, %58 : vector<1x128xf32>
    %60 = vector.extract_strided_slice %59 {offsets = [0, 0], sizes = [1, 64], strides = [1, 1]} : vector<1x128xf32> to vector<1x64xf32>
    %61 = vector.extract_strided_slice %59 {offsets = [0, 64], sizes = [1, 64], strides = [1, 1]} : vector<1x128xf32> to vector<1x64xf32>
    %62 = vector.extract_strided_slice %50 {offsets = [0, 128], sizes = [1, 64], strides = [1, 1]} : vector<1x192xf32> to vector<1x64xf32>
    %63 = vector.extract_strided_slice %51 {offsets = [0, 128], sizes = [1, 64], strides = [1, 1]} : vector<1x192xf32> to vector<1x64xf32>
    %64 = arith.addf %63, %46 : vector<1x64xf32>
    %65 = arith.mulf %60, %64 : vector<1x64xf32>
    %66 = arith.addf %62, %65 : vector<1x64xf32>
    %67 = math.tanh %66 : vector<1x64xf32>
    %cst_33 = arith.constant 1.000000e+00 : f32
    %68 = vector.broadcast %cst_33 : f32 to vector<1x64xf32>
    %69 = arith.subf %68, %61 : vector<1x64xf32>
    %70 = arith.mulf %69, %67 : vector<1x64xf32>
    %71 = arith.mulf %61, %42 : vector<1x64xf32>
    %72 = arith.addf %70, %71 : vector<1x64xf32>
    %73 = vector.extract_strided_slice %49 {offsets = [1, 0], sizes = [1, 192], strides = [1, 1]} : vector<8x192xf32> to vector<1x192xf32>
    %cst_34 = arith.constant dense<0.000000e+00> : vector<1x192xf32>
    %74 = tpu.matmul %72, %44, %cst_34 {dimension_numbers = #tpu.dot_dimension_numbers<[1], [0], [0], [1], [0, 0, 1, 1], [], []>} : vector<1x64xf32>, vector<64x192xf32>, vector<1x192xf32> -> vector<1x192xf32>
    %75 = vector.extract_strided_slice %73 {offsets = [0, 0], sizes = [1, 128], strides = [1, 1]} : vector<1x192xf32> to vector<1x128xf32>
    %76 = vector.extract_strided_slice %74 {offsets = [0, 0], sizes = [1, 128], strides = [1, 1]} : vector<1x192xf32> to vector<1x128xf32>
    %77 = arith.addf %75, %76 : vector<1x128xf32>
    %78 = arith.negf %77 : vector<1x128xf32>
    %79 = math.exp %78 : vector<1x128xf32>
    %cst_35 = arith.constant 1.000000e+00 : f32
    %80 = vector.broadcast %cst_35 : f32 to vector<1x128xf32>
    %81 = arith.addf %80, %79 : vector<1x128xf32>
    %82 = arith.divf %80, %81 : vector<1x128xf32>
    %83 = vector.extract_strided_slice %82 {offsets = [0, 0], sizes = [1, 64], strides = [1, 1]} : vector<1x128xf32> to vector<1x64xf32>
    %84 = vector.extract_strided_slice %82 {offsets = [0, 64], sizes = [1, 64], strides = [1, 1]} : vector<1x128xf32> to vector<1x64xf32>
    %85 = vector.extract_strided_slice %73 {offsets = [0, 128], sizes = [1, 64], strides = [1, 1]} : vector<1x192xf32> to vector<1x64xf32>
    %86 = vector.extract_strided_slice %74 {offsets = [0, 128], sizes = [1, 64], strides = [1, 1]} : vector<1x192xf32> to vector<1x64xf32>
    %87 = arith.addf %86, %46 : vector<1x64xf32>
    %88 = arith.mulf %83, %87 : vector<1x64xf32>
    %89 = arith.addf %85, %88 : vector<1x64xf32>
    %90 = math.tanh %89 : vector<1x64xf32>
    %cst_36 = arith.constant 1.000000e+00 : f32
    %91 = vector.broadcast %cst_36 : f32 to vector<1x64xf32>
    %92 = arith.subf %91, %84 : vector<1x64xf32>
    %93 = arith.mulf %92, %90 : vector<1x64xf32>
    %94 = arith.mulf %84, %72 : vector<1x64xf32>
    %95 = arith.addf %93, %94 : vector<1x64xf32>
    %96 = vector.extract_strided_slice %49 {offsets = [2, 0], sizes = [1, 192], strides = [1, 1]} : vector<8x192xf32> to vector<1x192xf32>
    %cst_37 = arith.constant dense<0.000000e+00> : vector<1x192xf32>
    %97 = tpu.matmul %95, %44, %cst_37 {dimension_numbers = #tpu.dot_dimension_numbers<[1], [0], [0], [1], [0, 0, 1, 1], [], []>} : vector<1x64xf32>, vector<64x192xf32>, vector<1x192xf32> -> vector<1x192xf32>
    %98 = vector.extract_strided_slice %96 {offsets = [0, 0], sizes = [1, 128], strides = [1, 1]} : vector<1x192xf32> to vector<1x128xf32>
    %99 = vector.extract_strided_slice %97 {offsets = [0, 0], sizes = [1, 128], strides = [1, 1]} : vector<1x192xf32> to vector<1x128xf32>
    %100 = arith.addf %98, %99 : vector<1x128xf32>
    %101 = arith.negf %100 : vector<1x128xf32>
    %102 = math.exp %101 : vector<1x128xf32>
    %cst_38 = arith.constant 1.000000e+00 : f32
    %103 = vector.broadcast %cst_38 : f32 to vector<1x128xf32>
    %104 = arith.addf %103, %102 : vector<1x128xf32>
    %105 = arith.divf %103, %104 : vector<1x128xf32>
    %106 = vector.extract_strided_slice %105 {offsets = [0, 0], sizes = [1, 64], strides = [1, 1]} : vector<1x128xf32> to vector<1x64xf32>
    %107 = vector.extract_strided_slice %105 {offsets = [0, 64], sizes = [1, 64], strides = [1, 1]} : vector<1x128xf32> to vector<1x64xf32>
    %108 = vector.extract_strided_slice %96 {offsets = [0, 128], sizes = [1, 64], strides = [1, 1]} : vector<1x192xf32> to vector<1x64xf32>
    %109 = vector.extract_strided_slice %97 {offsets = [0, 128], sizes = [1, 64], strides = [1, 1]} : vector<1x192xf32> to vector<1x64xf32>
    %110 = arith.addf %109, %46 : vector<1x64xf32>
    %111 = arith.mulf %106, %110 : vector<1x64xf32>
    %112 = arith.addf %108, %111 : vector<1x64xf32>
    %113 = math.tanh %112 : vector<1x64xf32>
    %cst_39 = arith.constant 1.000000e+00 : f32
    %114 = vector.broadcast %cst_39 : f32 to vector<1x64xf32>
    %115 = arith.subf %114, %107 : vector<1x64xf32>
    %116 = arith.mulf %115, %113 : vector<1x64xf32>
    %117 = arith.mulf %107, %95 : vector<1x64xf32>
    %118 = arith.addf %116, %117 : vector<1x64xf32>
    %119 = vector.extract_strided_slice %49 {offsets = [3, 0], sizes = [1, 192], strides = [1, 1]} : vector<8x192xf32> to vector<1x192xf32>
    %cst_40 = arith.constant dense<0.000000e+00> : vector<1x192xf32>
    %120 = tpu.matmul %118, %44, %cst_40 {dimension_numbers = #tpu.dot_dimension_numbers<[1], [0], [0], [1], [0, 0, 1, 1], [], []>} : vector<1x64xf32>, vector<64x192xf32>, vector<1x192xf32> -> vector<1x192xf32>
    %121 = vector.extract_strided_slice %119 {offsets = [0, 0], sizes = [1, 128], strides = [1, 1]} : vector<1x192xf32> to vector<1x128xf32>
    %122 = vector.extract_strided_slice %120 {offsets = [0, 0], sizes = [1, 128], strides = [1, 1]} : vector<1x192xf32> to vector<1x128xf32>
    %123 = arith.addf %121, %122 : vector<1x128xf32>
    %124 = arith.negf %123 : vector<1x128xf32>
    %125 = math.exp %124 : vector<1x128xf32>
    %cst_41 = arith.constant 1.000000e+00 : f32
    %126 = vector.broadcast %cst_41 : f32 to vector<1x128xf32>
    %127 = arith.addf %126, %125 : vector<1x128xf32>
    %128 = arith.divf %126, %127 : vector<1x128xf32>
    %129 = vector.extract_strided_slice %128 {offsets = [0, 0], sizes = [1, 64], strides = [1, 1]} : vector<1x128xf32> to vector<1x64xf32>
    %130 = vector.extract_strided_slice %128 {offsets = [0, 64], sizes = [1, 64], strides = [1, 1]} : vector<1x128xf32> to vector<1x64xf32>
    %131 = vector.extract_strided_slice %119 {offsets = [0, 128], sizes = [1, 64], strides = [1, 1]} : vector<1x192xf32> to vector<1x64xf32>
    %132 = vector.extract_strided_slice %120 {offsets = [0, 128], sizes = [1, 64], strides = [1, 1]} : vector<1x192xf32> to vector<1x64xf32>
    %133 = arith.addf %132, %46 : vector<1x64xf32>
    %134 = arith.mulf %129, %133 : vector<1x64xf32>
    %135 = arith.addf %131, %134 : vector<1x64xf32>
    %136 = math.tanh %135 : vector<1x64xf32>
    %cst_42 = arith.constant 1.000000e+00 : f32
    %137 = vector.broadcast %cst_42 : f32 to vector<1x64xf32>
    %138 = arith.subf %137, %130 : vector<1x64xf32>
    %139 = arith.mulf %138, %136 : vector<1x64xf32>
    %140 = arith.mulf %130, %118 : vector<1x64xf32>
    %141 = arith.addf %139, %140 : vector<1x64xf32>
    %142 = vector.extract_strided_slice %49 {offsets = [4, 0], sizes = [1, 192], strides = [1, 1]} : vector<8x192xf32> to vector<1x192xf32>
    %cst_43 = arith.constant dense<0.000000e+00> : vector<1x192xf32>
    %143 = tpu.matmul %141, %44, %cst_43 {dimension_numbers = #tpu.dot_dimension_numbers<[1], [0], [0], [1], [0, 0, 1, 1], [], []>} : vector<1x64xf32>, vector<64x192xf32>, vector<1x192xf32> -> vector<1x192xf32>
    %144 = vector.extract_strided_slice %142 {offsets = [0, 0], sizes = [1, 128], strides = [1, 1]} : vector<1x192xf32> to vector<1x128xf32>
    %145 = vector.extract_strided_slice %143 {offsets = [0, 0], sizes = [1, 128], strides = [1, 1]} : vector<1x192xf32> to vector<1x128xf32>
    %146 = arith.addf %144, %145 : vector<1x128xf32>
    %147 = arith.negf %146 : vector<1x128xf32>
    %148 = math.exp %147 : vector<1x128xf32>
    %cst_44 = arith.constant 1.000000e+00 : f32
    %149 = vector.broadcast %cst_44 : f32 to vector<1x128xf32>
    %150 = arith.addf %149, %148 : vector<1x128xf32>
    %151 = arith.divf %149, %150 : vector<1x128xf32>
    %152 = vector.extract_strided_slice %151 {offsets = [0, 0], sizes = [1, 64], strides = [1, 1]} : vector<1x128xf32> to vector<1x64xf32>
    %153 = vector.extract_strided_slice %151 {offsets = [0, 64], sizes = [1, 64], strides = [1, 1]} : vector<1x128xf32> to vector<1x64xf32>
    %154 = vector.extract_strided_slice %142 {offsets = [0, 128], sizes = [1, 64], strides = [1, 1]} : vector<1x192xf32> to vector<1x64xf32>
    %155 = vector.extract_strided_slice %143 {offsets = [0, 128], sizes = [1, 64], strides = [1, 1]} : vector<1x192xf32> to vector<1x64xf32>
    %156 = arith.addf %155, %46 : vector<1x64xf32>
    %157 = arith.mulf %152, %156 : vector<1x64xf32>
    %158 = arith.addf %154, %157 : vector<1x64xf32>
    %159 = math.tanh %158 : vector<1x64xf32>
    %cst_45 = arith.constant 1.000000e+00 : f32
    %160 = vector.broadcast %cst_45 : f32 to vector<1x64xf32>
    %161 = arith.subf %160, %153 : vector<1x64xf32>
    %162 = arith.mulf %161, %159 : vector<1x64xf32>
    %163 = arith.mulf %153, %141 : vector<1x64xf32>
    %164 = arith.addf %162, %163 : vector<1x64xf32>
    %165 = vector.extract_strided_slice %49 {offsets = [5, 0], sizes = [1, 192], strides = [1, 1]} : vector<8x192xf32> to vector<1x192xf32>
    %cst_46 = arith.constant dense<0.000000e+00> : vector<1x192xf32>
    %166 = tpu.matmul %164, %44, %cst_46 {dimension_numbers = #tpu.dot_dimension_numbers<[1], [0], [0], [1], [0, 0, 1, 1], [], []>} : vector<1x64xf32>, vector<64x192xf32>, vector<1x192xf32> -> vector<1x192xf32>
    %167 = vector.extract_strided_slice %165 {offsets = [0, 0], sizes = [1, 128], strides = [1, 1]} : vector<1x192xf32> to vector<1x128xf32>
    %168 = vector.extract_strided_slice %166 {offsets = [0, 0], sizes = [1, 128], strides = [1, 1]} : vector<1x192xf32> to vector<1x128xf32>
    %169 = arith.addf %167, %168 : vector<1x128xf32>
    %170 = arith.negf %169 : vector<1x128xf32>
    %171 = math.exp %170 : vector<1x128xf32>
    %cst_47 = arith.constant 1.000000e+00 : f32
    %172 = vector.broadcast %cst_47 : f32 to vector<1x128xf32>
    %173 = arith.addf %172, %171 : vector<1x128xf32>
    %174 = arith.divf %172, %173 : vector<1x128xf32>
    %175 = vector.extract_strided_slice %174 {offsets = [0, 0], sizes = [1, 64], strides = [1, 1]} : vector<1x128xf32> to vector<1x64xf32>
    %176 = vector.extract_strided_slice %174 {offsets = [0, 64], sizes = [1, 64], strides = [1, 1]} : vector<1x128xf32> to vector<1x64xf32>
    %177 = vector.extract_strided_slice %165 {offsets = [0, 128], sizes = [1, 64], strides = [1, 1]} : vector<1x192xf32> to vector<1x64xf32>
    %178 = vector.extract_strided_slice %166 {offsets = [0, 128], sizes = [1, 64], strides = [1, 1]} : vector<1x192xf32> to vector<1x64xf32>
    %179 = arith.addf %178, %46 : vector<1x64xf32>
    %180 = arith.mulf %175, %179 : vector<1x64xf32>
    %181 = arith.addf %177, %180 : vector<1x64xf32>
    %182 = math.tanh %181 : vector<1x64xf32>
    %cst_48 = arith.constant 1.000000e+00 : f32
    %183 = vector.broadcast %cst_48 : f32 to vector<1x64xf32>
    %184 = arith.subf %183, %176 : vector<1x64xf32>
    %185 = arith.mulf %184, %182 : vector<1x64xf32>
    %186 = arith.mulf %176, %164 : vector<1x64xf32>
    %187 = arith.addf %185, %186 : vector<1x64xf32>
    %188 = vector.extract_strided_slice %49 {offsets = [6, 0], sizes = [1, 192], strides = [1, 1]} : vector<8x192xf32> to vector<1x192xf32>
    %cst_49 = arith.constant dense<0.000000e+00> : vector<1x192xf32>
    %189 = tpu.matmul %187, %44, %cst_49 {dimension_numbers = #tpu.dot_dimension_numbers<[1], [0], [0], [1], [0, 0, 1, 1], [], []>} : vector<1x64xf32>, vector<64x192xf32>, vector<1x192xf32> -> vector<1x192xf32>
    %190 = vector.extract_strided_slice %188 {offsets = [0, 0], sizes = [1, 128], strides = [1, 1]} : vector<1x192xf32> to vector<1x128xf32>
    %191 = vector.extract_strided_slice %189 {offsets = [0, 0], sizes = [1, 128], strides = [1, 1]} : vector<1x192xf32> to vector<1x128xf32>
    %192 = arith.addf %190, %191 : vector<1x128xf32>
    %193 = arith.negf %192 : vector<1x128xf32>
    %194 = math.exp %193 : vector<1x128xf32>
    %cst_50 = arith.constant 1.000000e+00 : f32
    %195 = vector.broadcast %cst_50 : f32 to vector<1x128xf32>
    %196 = arith.addf %195, %194 : vector<1x128xf32>
    %197 = arith.divf %195, %196 : vector<1x128xf32>
    %198 = vector.extract_strided_slice %197 {offsets = [0, 0], sizes = [1, 64], strides = [1, 1]} : vector<1x128xf32> to vector<1x64xf32>
    %199 = vector.extract_strided_slice %197 {offsets = [0, 64], sizes = [1, 64], strides = [1, 1]} : vector<1x128xf32> to vector<1x64xf32>
    %200 = vector.extract_strided_slice %188 {offsets = [0, 128], sizes = [1, 64], strides = [1, 1]} : vector<1x192xf32> to vector<1x64xf32>
    %201 = vector.extract_strided_slice %189 {offsets = [0, 128], sizes = [1, 64], strides = [1, 1]} : vector<1x192xf32> to vector<1x64xf32>
    %202 = arith.addf %201, %46 : vector<1x64xf32>
    %203 = arith.mulf %198, %202 : vector<1x64xf32>
    %204 = arith.addf %200, %203 : vector<1x64xf32>
    %205 = math.tanh %204 : vector<1x64xf32>
    %cst_51 = arith.constant 1.000000e+00 : f32
    %206 = vector.broadcast %cst_51 : f32 to vector<1x64xf32>
    %207 = arith.subf %206, %199 : vector<1x64xf32>
    %208 = arith.mulf %207, %205 : vector<1x64xf32>
    %209 = arith.mulf %199, %187 : vector<1x64xf32>
    %210 = arith.addf %208, %209 : vector<1x64xf32>
    %211 = vector.extract_strided_slice %49 {offsets = [7, 0], sizes = [1, 192], strides = [1, 1]} : vector<8x192xf32> to vector<1x192xf32>
    %cst_52 = arith.constant dense<0.000000e+00> : vector<1x192xf32>
    %212 = tpu.matmul %210, %44, %cst_52 {dimension_numbers = #tpu.dot_dimension_numbers<[1], [0], [0], [1], [0, 0, 1, 1], [], []>} : vector<1x64xf32>, vector<64x192xf32>, vector<1x192xf32> -> vector<1x192xf32>
    %213 = vector.extract_strided_slice %211 {offsets = [0, 0], sizes = [1, 128], strides = [1, 1]} : vector<1x192xf32> to vector<1x128xf32>
    %214 = vector.extract_strided_slice %212 {offsets = [0, 0], sizes = [1, 128], strides = [1, 1]} : vector<1x192xf32> to vector<1x128xf32>
    %215 = arith.addf %213, %214 : vector<1x128xf32>
    %216 = arith.negf %215 : vector<1x128xf32>
    %217 = math.exp %216 : vector<1x128xf32>
    %cst_53 = arith.constant 1.000000e+00 : f32
    %218 = vector.broadcast %cst_53 : f32 to vector<1x128xf32>
    %219 = arith.addf %218, %217 : vector<1x128xf32>
    %220 = arith.divf %218, %219 : vector<1x128xf32>
    %221 = vector.extract_strided_slice %220 {offsets = [0, 0], sizes = [1, 64], strides = [1, 1]} : vector<1x128xf32> to vector<1x64xf32>
    %222 = vector.extract_strided_slice %220 {offsets = [0, 64], sizes = [1, 64], strides = [1, 1]} : vector<1x128xf32> to vector<1x64xf32>
    %223 = vector.extract_strided_slice %211 {offsets = [0, 128], sizes = [1, 64], strides = [1, 1]} : vector<1x192xf32> to vector<1x64xf32>
    %224 = vector.extract_strided_slice %212 {offsets = [0, 128], sizes = [1, 64], strides = [1, 1]} : vector<1x192xf32> to vector<1x64xf32>
    %225 = arith.addf %224, %46 : vector<1x64xf32>
    %226 = arith.mulf %221, %225 : vector<1x64xf32>
    %227 = arith.addf %223, %226 : vector<1x64xf32>
    %228 = math.tanh %227 : vector<1x64xf32>
    %cst_54 = arith.constant 1.000000e+00 : f32
    %229 = vector.broadcast %cst_54 : f32 to vector<1x64xf32>
    %230 = arith.subf %229, %222 : vector<1x64xf32>
    %231 = arith.mulf %230, %228 : vector<1x64xf32>
    %232 = arith.mulf %222, %210 : vector<1x64xf32>
    %233 = arith.addf %231, %232 : vector<1x64xf32>
    %234 = tpu.concatenate %72, %95, %118, %141, %164, %187, %210, %233 in 0 : vector<1x64xf32>, vector<1x64xf32>, vector<1x64xf32>, vector<1x64xf32>, vector<1x64xf32>, vector<1x64xf32>, vector<1x64xf32>, vector<1x64xf32> -> vector<8x64xf32>
    %c1_55 = arith.constant 1 : index
    %c0_56 = arith.constant 0 : index
    %c0_57 = arith.constant 0 : index
    %235 = vector.load %arg2[%c1_55, %c0_56, %c0_57] : memref<2x1x64xf32, #tpu.memory_space<vmem>>, vector<1x1x64xf32>
    %236 = vector.shape_cast %235 : vector<1x1x64xf32> to vector<1x64xf32>
    %c0_58 = arith.constant 0 : index
    %c0_59 = arith.constant 0 : index
    %237 = vector.load %arg5[%c0_58, %c0_59] : memref<128x192xf32, #tpu.memory_space<vmem>>, vector<64x192xf32>
    %c64 = arith.constant 64 : index
    %c0_60 = arith.constant 0 : index
    %238 = vector.load %arg5[%c64, %c0_60] : memref<128x192xf32, #tpu.memory_space<vmem>>, vector<64x192xf32>
    %c0_61 = arith.constant 0 : index
    %c0_62 = arith.constant 0 : index
    %239 = vector.load %arg6[%c0_61, %c0_62] : memref<1x256xf32, #tpu.memory_space<vmem>>, vector<1x192xf32>
    %c0_63 = arith.constant 0 : index
    %c192_64 = arith.constant 192 : index
    %240 = vector.load %arg6[%c0_63, %c192_64] : memref<1x256xf32, #tpu.memory_space<vmem>>, vector<1x64xf32>
    %cst_65 = arith.constant dense<0.000000e+00> : vector<8x192xf32>
    %241 = tpu.matmul %234, %237, %cst_65 {dimension_numbers = #tpu.dot_dimension_numbers<[1], [0], [0], [1], [0, 0, 1, 1], [], []>} : vector<8x64xf32>, vector<64x192xf32>, vector<8x192xf32> -> vector<8x192xf32>
    %242 = vector.broadcast %239 : vector<1x192xf32> to vector<8x192xf32>
    %243 = arith.addf %241, %242 : vector<8x192xf32>
    %244 = vector.extract_strided_slice %243 {offsets = [0, 0], sizes = [1, 192], strides = [1, 1]} : vector<8x192xf32> to vector<1x192xf32>
    %cst_66 = arith.constant dense<0.000000e+00> : vector<1x192xf32>
    %245 = tpu.matmul %236, %238, %cst_66 {dimension_numbers = #tpu.dot_dimension_numbers<[1], [0], [0], [1], [0, 0, 1, 1], [], []>} : vector<1x64xf32>, vector<64x192xf32>, vector<1x192xf32> -> vector<1x192xf32>
    %246 = vector.extract_strided_slice %244 {offsets = [0, 0], sizes = [1, 128], strides = [1, 1]} : vector<1x192xf32> to vector<1x128xf32>
    %247 = vector.extract_strided_slice %245 {offsets = [0, 0], sizes = [1, 128], strides = [1, 1]} : vector<1x192xf32> to vector<1x128xf32>
    %248 = arith.addf %246, %247 : vector<1x128xf32>
    %249 = arith.negf %248 : vector<1x128xf32>
    %250 = math.exp %249 : vector<1x128xf32>
    %cst_67 = arith.constant 1.000000e+00 : f32
    %251 = vector.broadcast %cst_67 : f32 to vector<1x128xf32>
    %252 = arith.addf %251, %250 : vector<1x128xf32>
    %253 = arith.divf %251, %252 : vector<1x128xf32>
    %254 = vector.extract_strided_slice %253 {offsets = [0, 0], sizes = [1, 64], strides = [1, 1]} : vector<1x128xf32> to vector<1x64xf32>
    %255 = vector.extract_strided_slice %253 {offsets = [0, 64], sizes = [1, 64], strides = [1, 1]} : vector<1x128xf32> to vector<1x64xf32>
    %256 = vector.extract_strided_slice %244 {offsets = [0, 128], sizes = [1, 64], strides = [1, 1]} : vector<1x192xf32> to vector<1x64xf32>
    %257 = vector.extract_strided_slice %245 {offsets = [0, 128], sizes = [1, 64], strides = [1, 1]} : vector<1x192xf32> to vector<1x64xf32>
    %258 = arith.addf %257, %240 : vector<1x64xf32>
    %259 = arith.mulf %254, %258 : vector<1x64xf32>
    %260 = arith.addf %256, %259 : vector<1x64xf32>
    %261 = math.tanh %260 : vector<1x64xf32>
    %cst_68 = arith.constant 1.000000e+00 : f32
    %262 = vector.broadcast %cst_68 : f32 to vector<1x64xf32>
    %263 = arith.subf %262, %255 : vector<1x64xf32>
    %264 = arith.mulf %263, %261 : vector<1x64xf32>
    %265 = arith.mulf %255, %236 : vector<1x64xf32>
    %266 = arith.addf %264, %265 : vector<1x64xf32>
    %267 = vector.extract_strided_slice %243 {offsets = [1, 0], sizes = [1, 192], strides = [1, 1]} : vector<8x192xf32> to vector<1x192xf32>
    %cst_69 = arith.constant dense<0.000000e+00> : vector<1x192xf32>
    %268 = tpu.matmul %266, %238, %cst_69 {dimension_numbers = #tpu.dot_dimension_numbers<[1], [0], [0], [1], [0, 0, 1, 1], [], []>} : vector<1x64xf32>, vector<64x192xf32>, vector<1x192xf32> -> vector<1x192xf32>
    %269 = vector.extract_strided_slice %267 {offsets = [0, 0], sizes = [1, 128], strides = [1, 1]} : vector<1x192xf32> to vector<1x128xf32>
    %270 = vector.extract_strided_slice %268 {offsets = [0, 0], sizes = [1, 128], strides = [1, 1]} : vector<1x192xf32> to vector<1x128xf32>
    %271 = arith.addf %269, %270 : vector<1x128xf32>
    %272 = arith.negf %271 : vector<1x128xf32>
    %273 = math.exp %272 : vector<1x128xf32>
    %cst_70 = arith.constant 1.000000e+00 : f32
    %274 = vector.broadcast %cst_70 : f32 to vector<1x128xf32>
    %275 = arith.addf %274, %273 : vector<1x128xf32>
    %276 = arith.divf %274, %275 : vector<1x128xf32>
    %277 = vector.extract_strided_slice %276 {offsets = [0, 0], sizes = [1, 64], strides = [1, 1]} : vector<1x128xf32> to vector<1x64xf32>
    %278 = vector.extract_strided_slice %276 {offsets = [0, 64], sizes = [1, 64], strides = [1, 1]} : vector<1x128xf32> to vector<1x64xf32>
    %279 = vector.extract_strided_slice %267 {offsets = [0, 128], sizes = [1, 64], strides = [1, 1]} : vector<1x192xf32> to vector<1x64xf32>
    %280 = vector.extract_strided_slice %268 {offsets = [0, 128], sizes = [1, 64], strides = [1, 1]} : vector<1x192xf32> to vector<1x64xf32>
    %281 = arith.addf %280, %240 : vector<1x64xf32>
    %282 = arith.mulf %277, %281 : vector<1x64xf32>
    %283 = arith.addf %279, %282 : vector<1x64xf32>
    %284 = math.tanh %283 : vector<1x64xf32>
    %cst_71 = arith.constant 1.000000e+00 : f32
    %285 = vector.broadcast %cst_71 : f32 to vector<1x64xf32>
    %286 = arith.subf %285, %278 : vector<1x64xf32>
    %287 = arith.mulf %286, %284 : vector<1x64xf32>
    %288 = arith.mulf %278, %266 : vector<1x64xf32>
    %289 = arith.addf %287, %288 : vector<1x64xf32>
    %290 = vector.extract_strided_slice %243 {offsets = [2, 0], sizes = [1, 192], strides = [1, 1]} : vector<8x192xf32> to vector<1x192xf32>
    %cst_72 = arith.constant dense<0.000000e+00> : vector<1x192xf32>
    %291 = tpu.matmul %289, %238, %cst_72 {dimension_numbers = #tpu.dot_dimension_numbers<[1], [0], [0], [1], [0, 0, 1, 1], [], []>} : vector<1x64xf32>, vector<64x192xf32>, vector<1x192xf32> -> vector<1x192xf32>
    %292 = vector.extract_strided_slice %290 {offsets = [0, 0], sizes = [1, 128], strides = [1, 1]} : vector<1x192xf32> to vector<1x128xf32>
    %293 = vector.extract_strided_slice %291 {offsets = [0, 0], sizes = [1, 128], strides = [1, 1]} : vector<1x192xf32> to vector<1x128xf32>
    %294 = arith.addf %292, %293 : vector<1x128xf32>
    %295 = arith.negf %294 : vector<1x128xf32>
    %296 = math.exp %295 : vector<1x128xf32>
    %cst_73 = arith.constant 1.000000e+00 : f32
    %297 = vector.broadcast %cst_73 : f32 to vector<1x128xf32>
    %298 = arith.addf %297, %296 : vector<1x128xf32>
    %299 = arith.divf %297, %298 : vector<1x128xf32>
    %300 = vector.extract_strided_slice %299 {offsets = [0, 0], sizes = [1, 64], strides = [1, 1]} : vector<1x128xf32> to vector<1x64xf32>
    %301 = vector.extract_strided_slice %299 {offsets = [0, 64], sizes = [1, 64], strides = [1, 1]} : vector<1x128xf32> to vector<1x64xf32>
    %302 = vector.extract_strided_slice %290 {offsets = [0, 128], sizes = [1, 64], strides = [1, 1]} : vector<1x192xf32> to vector<1x64xf32>
    %303 = vector.extract_strided_slice %291 {offsets = [0, 128], sizes = [1, 64], strides = [1, 1]} : vector<1x192xf32> to vector<1x64xf32>
    %304 = arith.addf %303, %240 : vector<1x64xf32>
    %305 = arith.mulf %300, %304 : vector<1x64xf32>
    %306 = arith.addf %302, %305 : vector<1x64xf32>
    %307 = math.tanh %306 : vector<1x64xf32>
    %cst_74 = arith.constant 1.000000e+00 : f32
    %308 = vector.broadcast %cst_74 : f32 to vector<1x64xf32>
    %309 = arith.subf %308, %301 : vector<1x64xf32>
    %310 = arith.mulf %309, %307 : vector<1x64xf32>
    %311 = arith.mulf %301, %289 : vector<1x64xf32>
    %312 = arith.addf %310, %311 : vector<1x64xf32>
    %313 = vector.extract_strided_slice %243 {offsets = [3, 0], sizes = [1, 192], strides = [1, 1]} : vector<8x192xf32> to vector<1x192xf32>
    %cst_75 = arith.constant dense<0.000000e+00> : vector<1x192xf32>
    %314 = tpu.matmul %312, %238, %cst_75 {dimension_numbers = #tpu.dot_dimension_numbers<[1], [0], [0], [1], [0, 0, 1, 1], [], []>} : vector<1x64xf32>, vector<64x192xf32>, vector<1x192xf32> -> vector<1x192xf32>
    %315 = vector.extract_strided_slice %313 {offsets = [0, 0], sizes = [1, 128], strides = [1, 1]} : vector<1x192xf32> to vector<1x128xf32>
    %316 = vector.extract_strided_slice %314 {offsets = [0, 0], sizes = [1, 128], strides = [1, 1]} : vector<1x192xf32> to vector<1x128xf32>
    %317 = arith.addf %315, %316 : vector<1x128xf32>
    %318 = arith.negf %317 : vector<1x128xf32>
    %319 = math.exp %318 : vector<1x128xf32>
    %cst_76 = arith.constant 1.000000e+00 : f32
    %320 = vector.broadcast %cst_76 : f32 to vector<1x128xf32>
    %321 = arith.addf %320, %319 : vector<1x128xf32>
    %322 = arith.divf %320, %321 : vector<1x128xf32>
    %323 = vector.extract_strided_slice %322 {offsets = [0, 0], sizes = [1, 64], strides = [1, 1]} : vector<1x128xf32> to vector<1x64xf32>
    %324 = vector.extract_strided_slice %322 {offsets = [0, 64], sizes = [1, 64], strides = [1, 1]} : vector<1x128xf32> to vector<1x64xf32>
    %325 = vector.extract_strided_slice %313 {offsets = [0, 128], sizes = [1, 64], strides = [1, 1]} : vector<1x192xf32> to vector<1x64xf32>
    %326 = vector.extract_strided_slice %314 {offsets = [0, 128], sizes = [1, 64], strides = [1, 1]} : vector<1x192xf32> to vector<1x64xf32>
    %327 = arith.addf %326, %240 : vector<1x64xf32>
    %328 = arith.mulf %323, %327 : vector<1x64xf32>
    %329 = arith.addf %325, %328 : vector<1x64xf32>
    %330 = math.tanh %329 : vector<1x64xf32>
    %cst_77 = arith.constant 1.000000e+00 : f32
    %331 = vector.broadcast %cst_77 : f32 to vector<1x64xf32>
    %332 = arith.subf %331, %324 : vector<1x64xf32>
    %333 = arith.mulf %332, %330 : vector<1x64xf32>
    %334 = arith.mulf %324, %312 : vector<1x64xf32>
    %335 = arith.addf %333, %334 : vector<1x64xf32>
    %336 = vector.extract_strided_slice %243 {offsets = [4, 0], sizes = [1, 192], strides = [1, 1]} : vector<8x192xf32> to vector<1x192xf32>
    %cst_78 = arith.constant dense<0.000000e+00> : vector<1x192xf32>
    %337 = tpu.matmul %335, %238, %cst_78 {dimension_numbers = #tpu.dot_dimension_numbers<[1], [0], [0], [1], [0, 0, 1, 1], [], []>} : vector<1x64xf32>, vector<64x192xf32>, vector<1x192xf32> -> vector<1x192xf32>
    %338 = vector.extract_strided_slice %336 {offsets = [0, 0], sizes = [1, 128], strides = [1, 1]} : vector<1x192xf32> to vector<1x128xf32>
    %339 = vector.extract_strided_slice %337 {offsets = [0, 0], sizes = [1, 128], strides = [1, 1]} : vector<1x192xf32> to vector<1x128xf32>
    %340 = arith.addf %338, %339 : vector<1x128xf32>
    %341 = arith.negf %340 : vector<1x128xf32>
    %342 = math.exp %341 : vector<1x128xf32>
    %cst_79 = arith.constant 1.000000e+00 : f32
    %343 = vector.broadcast %cst_79 : f32 to vector<1x128xf32>
    %344 = arith.addf %343, %342 : vector<1x128xf32>
    %345 = arith.divf %343, %344 : vector<1x128xf32>
    %346 = vector.extract_strided_slice %345 {offsets = [0, 0], sizes = [1, 64], strides = [1, 1]} : vector<1x128xf32> to vector<1x64xf32>
    %347 = vector.extract_strided_slice %345 {offsets = [0, 64], sizes = [1, 64], strides = [1, 1]} : vector<1x128xf32> to vector<1x64xf32>
    %348 = vector.extract_strided_slice %336 {offsets = [0, 128], sizes = [1, 64], strides = [1, 1]} : vector<1x192xf32> to vector<1x64xf32>
    %349 = vector.extract_strided_slice %337 {offsets = [0, 128], sizes = [1, 64], strides = [1, 1]} : vector<1x192xf32> to vector<1x64xf32>
    %350 = arith.addf %349, %240 : vector<1x64xf32>
    %351 = arith.mulf %346, %350 : vector<1x64xf32>
    %352 = arith.addf %348, %351 : vector<1x64xf32>
    %353 = math.tanh %352 : vector<1x64xf32>
    %cst_80 = arith.constant 1.000000e+00 : f32
    %354 = vector.broadcast %cst_80 : f32 to vector<1x64xf32>
    %355 = arith.subf %354, %347 : vector<1x64xf32>
    %356 = arith.mulf %355, %353 : vector<1x64xf32>
    %357 = arith.mulf %347, %335 : vector<1x64xf32>
    %358 = arith.addf %356, %357 : vector<1x64xf32>
    %359 = vector.extract_strided_slice %243 {offsets = [5, 0], sizes = [1, 192], strides = [1, 1]} : vector<8x192xf32> to vector<1x192xf32>
    %cst_81 = arith.constant dense<0.000000e+00> : vector<1x192xf32>
    %360 = tpu.matmul %358, %238, %cst_81 {dimension_numbers = #tpu.dot_dimension_numbers<[1], [0], [0], [1], [0, 0, 1, 1], [], []>} : vector<1x64xf32>, vector<64x192xf32>, vector<1x192xf32> -> vector<1x192xf32>
    %361 = vector.extract_strided_slice %359 {offsets = [0, 0], sizes = [1, 128], strides = [1, 1]} : vector<1x192xf32> to vector<1x128xf32>
    %362 = vector.extract_strided_slice %360 {offsets = [0, 0], sizes = [1, 128], strides = [1, 1]} : vector<1x192xf32> to vector<1x128xf32>
    %363 = arith.addf %361, %362 : vector<1x128xf32>
    %364 = arith.negf %363 : vector<1x128xf32>
    %365 = math.exp %364 : vector<1x128xf32>
    %cst_82 = arith.constant 1.000000e+00 : f32
    %366 = vector.broadcast %cst_82 : f32 to vector<1x128xf32>
    %367 = arith.addf %366, %365 : vector<1x128xf32>
    %368 = arith.divf %366, %367 : vector<1x128xf32>
    %369 = vector.extract_strided_slice %368 {offsets = [0, 0], sizes = [1, 64], strides = [1, 1]} : vector<1x128xf32> to vector<1x64xf32>
    %370 = vector.extract_strided_slice %368 {offsets = [0, 64], sizes = [1, 64], strides = [1, 1]} : vector<1x128xf32> to vector<1x64xf32>
    %371 = vector.extract_strided_slice %359 {offsets = [0, 128], sizes = [1, 64], strides = [1, 1]} : vector<1x192xf32> to vector<1x64xf32>
    %372 = vector.extract_strided_slice %360 {offsets = [0, 128], sizes = [1, 64], strides = [1, 1]} : vector<1x192xf32> to vector<1x64xf32>
    %373 = arith.addf %372, %240 : vector<1x64xf32>
    %374 = arith.mulf %369, %373 : vector<1x64xf32>
    %375 = arith.addf %371, %374 : vector<1x64xf32>
    %376 = math.tanh %375 : vector<1x64xf32>
    %cst_83 = arith.constant 1.000000e+00 : f32
    %377 = vector.broadcast %cst_83 : f32 to vector<1x64xf32>
    %378 = arith.subf %377, %370 : vector<1x64xf32>
    %379 = arith.mulf %378, %376 : vector<1x64xf32>
    %380 = arith.mulf %370, %358 : vector<1x64xf32>
    %381 = arith.addf %379, %380 : vector<1x64xf32>
    %382 = vector.extract_strided_slice %243 {offsets = [6, 0], sizes = [1, 192], strides = [1, 1]} : vector<8x192xf32> to vector<1x192xf32>
    %cst_84 = arith.constant dense<0.000000e+00> : vector<1x192xf32>
    %383 = tpu.matmul %381, %238, %cst_84 {dimension_numbers = #tpu.dot_dimension_numbers<[1], [0], [0], [1], [0, 0, 1, 1], [], []>} : vector<1x64xf32>, vector<64x192xf32>, vector<1x192xf32> -> vector<1x192xf32>
    %384 = vector.extract_strided_slice %382 {offsets = [0, 0], sizes = [1, 128], strides = [1, 1]} : vector<1x192xf32> to vector<1x128xf32>
    %385 = vector.extract_strided_slice %383 {offsets = [0, 0], sizes = [1, 128], strides = [1, 1]} : vector<1x192xf32> to vector<1x128xf32>
    %386 = arith.addf %384, %385 : vector<1x128xf32>
    %387 = arith.negf %386 : vector<1x128xf32>
    %388 = math.exp %387 : vector<1x128xf32>
    %cst_85 = arith.constant 1.000000e+00 : f32
    %389 = vector.broadcast %cst_85 : f32 to vector<1x128xf32>
    %390 = arith.addf %389, %388 : vector<1x128xf32>
    %391 = arith.divf %389, %390 : vector<1x128xf32>
    %392 = vector.extract_strided_slice %391 {offsets = [0, 0], sizes = [1, 64], strides = [1, 1]} : vector<1x128xf32> to vector<1x64xf32>
    %393 = vector.extract_strided_slice %391 {offsets = [0, 64], sizes = [1, 64], strides = [1, 1]} : vector<1x128xf32> to vector<1x64xf32>
    %394 = vector.extract_strided_slice %382 {offsets = [0, 128], sizes = [1, 64], strides = [1, 1]} : vector<1x192xf32> to vector<1x64xf32>
    %395 = vector.extract_strided_slice %383 {offsets = [0, 128], sizes = [1, 64], strides = [1, 1]} : vector<1x192xf32> to vector<1x64xf32>
    %396 = arith.addf %395, %240 : vector<1x64xf32>
    %397 = arith.mulf %392, %396 : vector<1x64xf32>
    %398 = arith.addf %394, %397 : vector<1x64xf32>
    %399 = math.tanh %398 : vector<1x64xf32>
    %cst_86 = arith.constant 1.000000e+00 : f32
    %400 = vector.broadcast %cst_86 : f32 to vector<1x64xf32>
    %401 = arith.subf %400, %393 : vector<1x64xf32>
    %402 = arith.mulf %401, %399 : vector<1x64xf32>
    %403 = arith.mulf %393, %381 : vector<1x64xf32>
    %404 = arith.addf %402, %403 : vector<1x64xf32>
    %405 = vector.extract_strided_slice %243 {offsets = [7, 0], sizes = [1, 192], strides = [1, 1]} : vector<8x192xf32> to vector<1x192xf32>
    %cst_87 = arith.constant dense<0.000000e+00> : vector<1x192xf32>
    %406 = tpu.matmul %404, %238, %cst_87 {dimension_numbers = #tpu.dot_dimension_numbers<[1], [0], [0], [1], [0, 0, 1, 1], [], []>} : vector<1x64xf32>, vector<64x192xf32>, vector<1x192xf32> -> vector<1x192xf32>
    %407 = vector.extract_strided_slice %405 {offsets = [0, 0], sizes = [1, 128], strides = [1, 1]} : vector<1x192xf32> to vector<1x128xf32>
    %408 = vector.extract_strided_slice %406 {offsets = [0, 0], sizes = [1, 128], strides = [1, 1]} : vector<1x192xf32> to vector<1x128xf32>
    %409 = arith.addf %407, %408 : vector<1x128xf32>
    %410 = arith.negf %409 : vector<1x128xf32>
    %411 = math.exp %410 : vector<1x128xf32>
    %cst_88 = arith.constant 1.000000e+00 : f32
    %412 = vector.broadcast %cst_88 : f32 to vector<1x128xf32>
    %413 = arith.addf %412, %411 : vector<1x128xf32>
    %414 = arith.divf %412, %413 : vector<1x128xf32>
    %415 = vector.extract_strided_slice %414 {offsets = [0, 0], sizes = [1, 64], strides = [1, 1]} : vector<1x128xf32> to vector<1x64xf32>
    %416 = vector.extract_strided_slice %414 {offsets = [0, 64], sizes = [1, 64], strides = [1, 1]} : vector<1x128xf32> to vector<1x64xf32>
    %417 = vector.extract_strided_slice %405 {offsets = [0, 128], sizes = [1, 64], strides = [1, 1]} : vector<1x192xf32> to vector<1x64xf32>
    %418 = vector.extract_strided_slice %406 {offsets = [0, 128], sizes = [1, 64], strides = [1, 1]} : vector<1x192xf32> to vector<1x64xf32>
    %419 = arith.addf %418, %240 : vector<1x64xf32>
    %420 = arith.mulf %415, %419 : vector<1x64xf32>
    %421 = arith.addf %417, %420 : vector<1x64xf32>
    %422 = math.tanh %421 : vector<1x64xf32>
    %cst_89 = arith.constant 1.000000e+00 : f32
    %423 = vector.broadcast %cst_89 : f32 to vector<1x64xf32>
    %424 = arith.subf %423, %416 : vector<1x64xf32>
    %425 = arith.mulf %424, %422 : vector<1x64xf32>
    %426 = arith.mulf %416, %404 : vector<1x64xf32>
    %427 = arith.addf %425, %426 : vector<1x64xf32>
    %428 = tpu.concatenate %266, %289, %312, %335, %358, %381, %404, %427 in 0 : vector<1x64xf32>, vector<1x64xf32>, vector<1x64xf32>, vector<1x64xf32>, vector<1x64xf32>, vector<1x64xf32>, vector<1x64xf32>, vector<1x64xf32> -> vector<8x64xf32>
    %c0_90 = arith.constant 0 : index
    %c0_91 = arith.constant 0 : index
    %429 = vector.load %arg7[%c0_90, %c0_91] : memref<8x64xf32, #tpu.memory_space<vmem>>, vector<8x64xf32>
    tpu.vector_store %arg7[%c0_90, %c0_91], %428 {strides = array<i32>} : memref<8x64xf32, #tpu.memory_space<vmem>>, vector<8x64xf32>,
    %c0_92 = arith.constant 0 : index
    %c0_93 = arith.constant 0 : index
    %c0_94 = arith.constant 0 : index
    %430 = vector.load %arg8[%c0_92, %c0_93, %c0_94] : memref<2x1x64xf32, #tpu.memory_space<vmem>>, vector<1x1x64xf32>
    %431 = vector.shape_cast %430 : vector<1x1x64xf32> to vector<1x64xf32>
    %432 = vector.shape_cast %233 : vector<1x64xf32> to vector<1x1x64xf32>
    tpu.vector_store %arg8[%c0_92, %c0_93, %c0_94], %432 {strides = array<i32>} : memref<2x1x64xf32, #tpu.memory_space<vmem>>, vector<1x1x64xf32>,
    %c1_95 = arith.constant 1 : index
    %c0_96 = arith.constant 0 : index
    %c0_97 = arith.constant 0 : index
    %433 = vector.load %arg8[%c1_95, %c0_96, %c0_97] : memref<2x1x64xf32, #tpu.memory_space<vmem>>, vector<1x1x64xf32>
    %434 = vector.shape_cast %433 : vector<1x1x64xf32> to vector<1x64xf32>
    %435 = vector.shape_cast %427 : vector<1x64xf32> to vector<1x1x64xf32>
    tpu.vector_store %arg8[%c1_95, %c0_96, %c0_97], %435 {strides = array<i32>} : memref<2x1x64xf32, #tpu.memory_space<vmem>>, vector<1x1x64xf32>,
    return
  }
}

</mosaic_0001>

<llo_original>
// kernel: encode_sequence.1
$region0: #{encode_sequence.1}
  #allocation0 [shape = 'u32[]', space=smem, size = 0x4, offset = 0x4, fixed_abs, tag = 'smem constant byte address 0x4 - core index']
  #allocation1 [shape = 'u32[144,128]{1,0:T(1,128)}', space=vmem, size = 0x12000, scoped, tag = 'internal scratch']
  %s0 = inlined_call_operand.vmem [shape: s32[8], index: 0, kind: input, shape index: {}]
  %s1 = inlined_call_operand.vmem [shape: f32[50,32], index: 1, kind: input, shape index: {}]
  %s2 = inlined_call_operand.vmem [shape: f32[2,1,64], index: 2, kind: input, shape index: {}]
  %s3 = inlined_call_operand.vmem [shape: f32[96,192], index: 3, kind: input, shape index: {}]
  %s4 = inlined_call_operand.vmem [shape: f32[1,256], index: 4, kind: input, shape index: {}]
  %s5 = inlined_call_operand.vmem [shape: f32[128,192], index: 5, kind: input, shape index: {}]
  %s6 = inlined_call_operand.vmem [shape: f32[1,256], index: 6, kind: input, shape index: {}]
  %s7 = inlined_call_operand.hbm [shape: f32[8,64], index: 7, kind: output, shape index: {0}]
  %s8 = inlined_call_operand.hbm [shape: f32[2,1,64], index: 8, kind: output, shape index: {1}]
  %9 = xla_tuple %s7, %s8
  %s10 = sld [smem:[#allocation0]]
  $region50: #{encode_sequence.1} parent=0
    _
  %s12 = ssub.s32 1, %s10
  %s13 = scalar_select 0, %s12, %s10
  $region1: #{encode_sequence.1} parent=0
    #allocation2 [shape = 'u8[512]{0}', space=smem, size = 0x200, scoped, tag = 'input window, operand 0, single buffered']
    #allocation3 [shape = 's32[1]{0}', space=sflag, size = 0x4, scoped, tag = 'scoped memory for encode_sequence.1']
    #allocation4 [shape = 's32[1]{0}', space=sflag, size = 0x4, scoped, tag = 'scoped memory for encode_sequence.1']
    #allocation5 [shape = 'u8[4096]{0}', space=vmem, size = 0x1000, scoped, tag = 'output window, operand 0, single buffered']
    #allocation6 [shape = 'u8[1024]{0}', space=vmem, size = 0x400, scoped, tag = 'output window, operand 1, single buffered']
    #allocation7 [shape = 's32[1]{0}', space=sflag, size = 0x4, scoped, tag = 'scoped memory for encode_sequence.1']
    %14 = vsyncpa [#allocation4], 0
    %15 = vsyncpa [#allocation3], 0
    %16 = vsyncpa [#allocation7], 0
    // Predicated region
    $region2: #{encode_sequence.1} parent=1 // pred_check
      _
    $region3: #{encode_sequence.1} parent=1 // pred_check_branch
      %18 = sbr.rel (0) target = $region5
    $region4: #{encode_sequence.1} parent=1 // pred_region
      %s20 = ssub.s32 16, 16
      %21 = vsyncadd [#allocation4], %s20
      %s23 = sshll.u32 %s0, 4
      %s24 = int_to_ptr.vmem [resolvable:$true] %s23
      %26 = dma.vmem_to_smem %s24, 16, [#allocation2], [#allocation4]
    $region5: #{encode_sequence.1} parent=1 // pred_fallthru
      _
    // Predicated region
    $region6: #{encode_sequence.1} parent=1 // pred_check
      _
    $region7: #{encode_sequence.1} parent=1 // pred_check_branch
      %28 = sbr.rel (0) target = $region9
    $region8: #{encode_sequence.1} parent=1 // pred_region
      _
    $region9: #{encode_sequence.1} parent=1 // pred_fallthru
      _
    // Predicated region
    $region10: #{encode_sequence.1} parent=1 // pred_check
      _
    $region11: #{encode_sequence.1} parent=1 // pred_check_branch
      %30 = sbr.rel (0) target = $region13
    $region12: #{encode_sequence.1} parent=1 // pred_region
      _
    $region13: #{encode_sequence.1} parent=1 // pred_fallthru
      _
    // Predicated region
    $region14: #{encode_sequence.1} parent=1 // pred_check
      _
    $region15: #{encode_sequence.1} parent=1 // pred_check_branch
      %32 = sbr.rel (0) target = $region17
    $region16: #{encode_sequence.1} parent=1 // pred_region
      _
    $region17: #{encode_sequence.1} parent=1 // pred_fallthru
      _
    // Predicated region
    $region18: #{encode_sequence.1} parent=1 // pred_check
      _
    $region19: #{encode_sequence.1} parent=1 // pred_check_branch
      %34 = sbr.rel (0) target = $region21
    $region20: #{encode_sequence.1} parent=1 // pred_region
      _
    $region21: #{encode_sequence.1} parent=1 // pred_fallthru
      _
    // Predicated region
    $region22: #{encode_sequence.1} parent=1 // pred_check
      _
    $region23: #{encode_sequence.1} parent=1 // pred_check_branch
      %36 = sbr.rel (0) target = $region25
    $region24: #{encode_sequence.1} parent=1 // pred_region
      _
    $region25: #{encode_sequence.1} parent=1 // pred_fallthru
      _
    // Predicated region
    $region26: #{encode_sequence.1} parent=1 // pred_check
      _
    $region27: #{encode_sequence.1} parent=1 // pred_check_branch
      %38 = sbr.rel (0) target = $region29
    $region28: #{encode_sequence.1} parent=1 // pred_region
      _
    $region29: #{encode_sequence.1} parent=1 // pred_fallthru
      _
    // Predicated region
    $region30: #{encode_sequence.1} parent=1 // pred_check
      _
    $region31: #{encode_sequence.1} parent=1 // pred_check_branch
      %40 = sbr.rel (0) target = $region33
    $region32: #{encode_sequence.1} parent=1 // pred_region
      %41 = dma.done [#allocation4], 16
    $region33: #{encode_sequence.1} parent=1 // pred_fallthru
      _
    %42 = sfence
    %s43 = sld [smem:[#allocation2]]
    %p44 = scmp.gt.s32.totalorder %s43, 0
    %s45 = scalar_select %p44, %s43, 0
    %p46 = scmp.lt.s32.totalorder %s45, 49
    %s47 = scalar_select %p46, %s45, 49
    %s48 = scalar_lea.vmem %s1, %s47
    %v49 = vld [vmem:[%s48] sm:$0x1]
    %s50 = sld [smem:[#allocation2 + $0x1]]
    %p51 = scmp.gt.s32.totalorder %s50, 0
    %s52 = scalar_select %p51, %s50, 0
    %p53 = scmp.lt.s32.totalorder %s52, 49
    %s54 = scalar_select %p53, %s52, 49
    %s55 = scalar_lea.vmem %s1, %s54
    %v56 = vld [vmem:[%s55] sm:$0x1]
    %s57 = sld [smem:[#allocation2 + $0x2]]
    %p58 = scmp.gt.s32.totalorder %s57, 0
    %s59 = scalar_select %p58, %s57, 0
    %p60 = scmp.lt.s32.totalorder %s59, 49
    %s61 = scalar_select %p60, %s59, 49
    %s62 = scalar_lea.vmem %s1, %s61
    %v63 = vld [vmem:[%s62] sm:$0x1]
    %s64 = sld [smem:[#allocation2 + $0x3]]
    %p65 = scmp.gt.s32.totalorder %s64, 0
    %s66 = scalar_select %p65, %s64, 0
    %p67 = scmp.lt.s32.totalorder %s66, 49
    %s68 = scalar_select %p67, %s66, 49
    %s69 = scalar_lea.vmem %s1, %s68
    %v70 = vld [vmem:[%s69] sm:$0x1]
    %s71 = sld [smem:[#allocation2 + $0x4]]
    %p72 = scmp.gt.s32.totalorder %s71, 0
    %s73 = scalar_select %p72, %s71, 0
    %p74 = scmp.lt.s32.totalorder %s73, 49
    %s75 = scalar_select %p74, %s73, 49
    %s76 = scalar_lea.vmem %s1, %s75
    %v77 = vld [vmem:[%s76] sm:$0x1]
    %s78 = sld [smem:[#allocation2 + $0x5]]
    %p79 = scmp.gt.s32.totalorder %s78, 0
    %s80 = scalar_select %p79, %s78, 0
    %p81 = scmp.lt.s32.totalorder %s80, 49
    %s82 = scalar_select %p81, %s80, 49
    %s83 = scalar_lea.vmem %s1, %s82
    %v84 = vld [vmem:[%s83] sm:$0x1]
    %s85 = sld [smem:[#allocation2 + $0x6]]
    %p86 = scmp.gt.s32.totalorder %s85, 0
    %s87 = scalar_select %p86, %s85, 0
    %p88 = scmp.lt.s32.totalorder %s87, 49
    %s89 = scalar_select %p88, %s87, 49
    %s90 = scalar_lea.vmem %s1, %s89
    %v91 = vld [vmem:[%s90] sm:$0x1]
    %s92 = sld [smem:[#allocation2 + $0x7]]
    %p93 = scmp.gt.s32.totalorder %s92, 0
    %s94 = scalar_select %p93, %s92, 0
    %p95 = scmp.lt.s32.totalorder %s94, 49
    %s96 = scalar_select %p95, %s94, 49
    %s97 = scalar_lea.vmem %s1, %s96
    %v98 = vld [vmem:[%s97] sm:$0x1]
    %v100 = vrot.slane %v56, 7
    %v103 = vrot.slane %v63, 6
    %v106 = vrot.slane %v70, 5
    %v109 = vrot.slane %v77, 4
    %v112 = vrot.slane %v84, 3
    %v115 = vrot.slane %v91, 2
    %v118 = vrot.slane %v98, 1
    %vm120 = vcmask 1040384
    %v121 = vsel %vm120, %v49, %v100
    %vm122 = vcmask 1041408
    %v123 = vsel %vm122, %v121, %v103
    %vm124 = vcmask 1042432
    %v125 = vsel %vm124, %v123, %v106
    %vm126 = vcmask 1043456
    %v127 = vsel %vm126, %v125, %v109
    %vm128 = vcmask 1044480
    %v129 = vsel %vm128, %v127, %v112
    %vm130 = vcmask 1045504
    %v131 = vsel %vm130, %v129, %v115
    %vm132 = vcmask 1046528
    %v133 = vsel %vm132, %v131, %v118
    %v134 = vld [vmem:[%s2] sm:$0x1]
    %v135 = vld [vmem:[%s3] sm:$0xff]
    %v136 = vld [vmem:[%s3 + $0x8] sm:$0xff]
    %v137 = vld [vmem:[%s3 + $0x10] sm:$0xff]
    %v138 = vld [vmem:[%s3 + $0x18] sm:$0xff]
    %v139 = vld [vmem:[%s3 + $0x20] sm:$0xff]
    %v140 = vld [vmem:[%s3 + $0x28] sm:$0xff]
    %v141 = vld [vmem:[%s3 + $0x30] sm:$0xff]
    %v142 = vld [vmem:[%s3 + $0x38] sm:$0xff]
    %v143 = vld [vmem:[%s3 + $0x40] sm:$0xff]
    %v144 = vld [vmem:[%s3 + $0x48] sm:$0xff]
    %v145 = vld [vmem:[%s3 + $0x50] sm:$0xff]
    %v146 = vld [vmem:[%s3 + $0x58] sm:$0xff]
    %v147 = vld [vmem:[%s3 + $0x60] sm:$0xff]
    %v148 = vld [vmem:[%s3 + $0x68] sm:$0xff]
    %v149 = vld [vmem:[%s3 + $0x70] sm:$0xff]
    %v150 = vld [vmem:[%s3 + $0x78] sm:$0xff]
    %v151 = vld [vmem:[%s3 + $0x80] sm:$0xff]
    %v152 = vld [vmem:[%s3 + $0x88] sm:$0xff]
    %v153 = vld [vmem:[%s3 + $0x90] sm:$0xff]
    %v154 = vld [vmem:[%s3 + $0x98] sm:$0xff]
    %v155 = vld [vmem:[%s3 + $0xa0] sm:$0xff]
    %v156 = vld [vmem:[%s3 + $0xa8] sm:$0xff]
    %v157 = vld [vmem:[%s3 + $0xb0] sm:$0xff]
    %v158 = vld [vmem:[%s3 + $0xb8] sm:$0xff]
    %v159 = vld [vmem:[%s4] sm:$0x3]
    %v160 = vld [vmem:[%s4 + $0x1] sm:$0x1]
    %v162 = vlaneseq
    %v163 = vshrl.u32 %v162, 7
    %v164 = vsub.s32 0, %v163
    %v165 = vrot.slane %v159, %v164
    %v166 = vlaneseq
    %v167 = vshrl.u32 %v166, 7
    %v168 = vsub.s32 1, %v167
    %v169 = vrot.slane %v159, %v168
    %vm172 = vcmask 261120
    %v174 = vsel %vm172, %v133, 0
    %176 = vmatprep.subr.mxu0 0.0
    %177 = vmatpush1.msra.mxu0 0.0
    %178 = vmatprep.subr.mxu0 0.0
    %179 = vmatpush1.msra.mxu0 0.0
    %180 = vmatprep.subr.mxu0 0.0
    %181 = vmatpush1.msra.mxu0 0.0
    %182 = vmatprep.subr.mxu0 0.0
    %183 = vmatpush1.msra.mxu0 0.0
    %184 = vmatprep.subr.mxu0 0.0
    %185 = vmatpush1.msra.mxu0 0.0
    %186 = vmatprep.subr.mxu0 0.0
    %187 = vmatpush1.msra.mxu0 0.0
    %188 = vmatprep.subr.mxu0 0.0
    %189 = vmatpush1.msra.mxu0 0.0
    %190 = vmatprep.subr.mxu0 0.0
    %191 = vmatpush1.msra.mxu0 0.0
    %192 = vmatprep.subr.mxu0 0.0
    %193 = vmatpush1.msra.mxu0 0.0
    %194 = vmatprep.subr.mxu0 0.0
    %195 = vmatpush1.msra.mxu0 0.0
    %196 = vmatprep.subr.mxu0 0.0
    %197 = vmatpush1.msra.mxu0 0.0
    %198 = vmatprep.subr.mxu0 0.0
    %199 = vmatpush1.msra.mxu0 0.0
    %200 = vmatprep.subr.mxu0 %v142
    %201 = vmatpush1.msra.mxu0 %v141
    %202 = vmatprep.subr.mxu0 %v140
    %203 = vmatpush1.msra.mxu0 %v139
    %204 = vmatprep.subr.mxu0 %v138
    %205 = vmatpush1.msra.mxu0 %v137
    %206 = vmatprep.subr.mxu0 %v136
    %207 = vmatpush1.msra.mxu0 %v135
    %208 = vmatprep.subr.mxu0 0.0
    %209 = vmatpush2.msra.mxu0 0.0
    %210 = vmatprep.subr.mxu0 0.0
    %211 = vmatpush2.msra.mxu0 0.0
    %212 = vmatprep.subr.mxu0 0.0
    %213 = vmatpush2.msra.mxu0 0.0
    %214 = vmatprep.subr.mxu0 0.0
    %215 = vmatpush2.msra.mxu0 0.0
    %216 = vmatprep.subr.mxu0 0.0
    %217 = vmatpush2.msra.mxu0 0.0
    %218 = vmatprep.subr.mxu0 0.0
    %219 = vmatpush2.msra.mxu0 0.0
    %220 = vmatprep.subr.mxu0 0.0
    %221 = vmatpush2.msra.mxu0 0.0
    %222 = vmatprep.subr.mxu0 0.0
    %223 = vmatpush2.msra.mxu0 0.0
    %224 = vmatprep.subr.mxu0 0.0
    %225 = vmatpush2.msra.mxu0 0.0
    %226 = vmatprep.subr.mxu0 0.0
    %227 = vmatpush2.msra.mxu0 0.0
    %228 = vmatprep.subr.mxu0 0.0
    %229 = vmatpush2.msra.mxu0 0.0
    %230 = vmatprep.subr.mxu0 0.0
    %231 = vmatpush2.msra.mxu0 0.0
    %232 = vmatprep.subr.mxu0 0.0
    %233 = vmatpush2.msra.mxu0 0.0
    %234 = vmatprep.subr.mxu0 0.0
    %235 = vmatpush2.msra.mxu0 0.0
    %236 = vmatprep.subr.mxu0 0.0
    %237 = vmatpush2.msra.mxu0 0.0
    %238 = vmatprep.subr.mxu0 0.0
    %239 = vmatpush2.msra.mxu0 0.0
    %240 = vmatprep.mubr.f32.mxu0 0.0
    %241 = vmatmul.mubr.f32.gmra.mxu0 %v174
    %v242 = vpop.f32.mrf.mxu0
    %v243 = vadd.f32 %v165, %v242
    %v244 = vpop.f32.mrf.mxu0
    %v245 = vadd.f32 %v169, %v244
    %246 = vdwg.mxu0
    %vm247 = vcmask 523264
    %v249 = vsel %vm247, %v134, 0
    %251 = vmatprep.subr.mxu0 0.0
    %252 = vmatpush1.msra.mxu0 0.0
    %253 = vmatprep.subr.mxu0 0.0
    %254 = vmatpush1.msra.mxu0 0.0
    %255 = vmatprep.subr.mxu0 0.0
    %256 = vmatpush1.msra.mxu0 0.0
    %257 = vmatprep.subr.mxu0 0.0
    %258 = vmatpush1.msra.mxu0 0.0
    %259 = vmatprep.subr.mxu0 0.0
    %260 = vmatpush1.msra.mxu0 0.0
    %261 = vmatprep.subr.mxu0 0.0
    %262 = vmatpush1.msra.mxu0 0.0
    %263 = vmatprep.subr.mxu0 0.0
    %264 = vmatpush1.msra.mxu0 0.0
    %265 = vmatprep.subr.mxu0 0.0
    %266 = vmatpush1.msra.mxu0 0.0
    %267 = vmatprep.subr.mxu0 %v158
    %268 = vmatpush1.msra.mxu0 %v157
    %269 = vmatprep.subr.mxu0 %v156
    %270 = vmatpush1.msra.mxu0 %v155
    %271 = vmatprep.subr.mxu0 %v154
    %272 = vmatpush1.msra.mxu0 %v153
    %273 = vmatprep.subr.mxu0 %v152
    %274 = vmatpush1.msra.mxu0 %v151
    %275 = vmatprep.subr.mxu0 %v150
    %276 = vmatpush1.msra.mxu0 %v149
    %277 = vmatprep.subr.mxu0 %v148
    %278 = vmatpush1.msra.mxu0 %v147
    %279 = vmatprep.subr.mxu0 %v146
    %280 = vmatpush1.msra.mxu0 %v145
    %281 = vmatprep.subr.mxu0 %v144
    %282 = vmatpush1.msra.mxu0 %v143
    %283 = vmatprep.subr.mxu0 0.0
    %284 = vmatpush2.msra.mxu0 0.0
    %285 = vmatprep.subr.mxu0 0.0
    %286 = vmatpush2.msra.mxu0 0.0
    %287 = vmatprep.subr.mxu0 0.0
    %288 = vmatpush2.msra.mxu0 0.0
    %289 = vmatprep.subr.mxu0 0.0
    %290 = vmatpush2.msra.mxu0 0.0
    %291 = vmatprep.subr.mxu0 0.0
    %292 = vmatpush2.msra.mxu0 0.0
    %293 = vmatprep.subr.mxu0 0.0
    %294 = vmatpush2.msra.mxu0 0.0
    %295 = vmatprep.subr.mxu0 0.0
    %296 = vmatpush2.msra.mxu0 0.0
    %297 = vmatprep.subr.mxu0 0.0
    %298 = vmatpush2.msra.mxu0 0.0
    %299 = vmatprep.subr.mxu0 0.0
    %300 = vmatpush2.msra.mxu0 0.0
    %301 = vmatprep.subr.mxu0 0.0
    %302 = vmatpush2.msra.mxu0 0.0
    %303 = vmatprep.subr.mxu0 0.0
    %304 = vmatpush2.msra.mxu0 0.0
    %305 = vmatprep.subr.mxu0 0.0
    %306 = vmatpush2.msra.mxu0 0.0
    %307 = vmatprep.subr.mxu0 0.0
    %308 = vmatpush2.msra.mxu0 0.0
    %309 = vmatprep.subr.mxu0 0.0
    %310 = vmatpush2.msra.mxu0 0.0
    %311 = vmatprep.subr.mxu0 0.0
    %312 = vmatpush2.msra.mxu0 0.0
    %313 = vmatprep.subr.mxu0 0.0
    %314 = vmatpush2.msra.mxu0 0.0
    %315 = vmatprep.mubr.f32.mxu0 0.0
    %316 = vmatmul.mubr.f32.gmra.mxu0 %v249
    %v317 = vpop.f32.mrf.mxu0
    %v318 = vadd.f32 0.0, %v317
    %v319 = vpop.f32.mrf.mxu0
    %v320 = vadd.f32 0.0, %v319
    %321 = vdwg.mxu0
    %v322 = vadd.f32 %v243, %v318
    %v323 = vxor.u32 %v322, 2147483648
    %v324 = vmul.f32 %v323, 1.442695
    %v325 = vpow.pop %v324
    %v326 = vadd.f32 %v325, 1.0
    %v327 = vrcp.pop %v326
    %v328 = vmul.f32 1.0, %v327
    %v330 = vlaneseq
    %v331 = vshrl.u32 %v330, 7
    %v332 = vsub.s32 0, %v331
    %v333 = vrot.slane %v160, %v332
    %334 = vrot.lane.b32.xlu0 %v333, 64
    %v335 = vpop.permute.xlu0 %334
    %v337 = vadd.f32 %v320, %v335
    %v338 = vmul.f32 %v328, %v337
    %v339 = vadd.f32 %v245, %v338
    %v340 = vtanh.pop %v339
    %v341 = vsub.f32 1.0, %v328
    %343 = vrot.lane.b32.xlu0 %v340, 64
    %v344 = vpop.permute.xlu0 %343
    %v346 = vmul.f32 %v341, %v344
    %v347 = vlaneseq
    %v348 = vshrl.u32 %v347, 7
    %v349 = vsub.s32 0, %v348
    %v350 = vrot.slane %v134, %v349
    %351 = vrot.lane.b32.xlu0 %v350, 64
    %v352 = vpop.permute.xlu0 %351
    %v354 = vmul.f32 %v328, %v352
    %v355 = vadd.f32 %v346, %v354
    %357 = vrot.lane.b32.xlu0 %v355, 64
    %v358 = vpop.permute.xlu0 %357
    %v359 = vsel %vm247, %v358, 0
    %361 = vmatprep.subr.mxu0 0.0
    %362 = vmatpush1.msra.mxu0 0.0
    %363 = vmatprep.subr.mxu0 0.0
    %364 = vmatpush1.msra.mxu0 0.0
    %365 = vmatprep.subr.mxu0 0.0
    %366 = vmatpush1.msra.mxu0 0.0
    %367 = vmatprep.subr.mxu0 0.0
    %368 = vmatpush1.msra.mxu0 0.0
    %369 = vmatprep.subr.mxu0 0.0
    %370 = vmatpush1.msra.mxu0 0.0
    %371 = vmatprep.subr.mxu0 0.0
    %372 = vmatpush1.msra.mxu0 0.0
    %373 = vmatprep.subr.mxu0 0.0
    %374 = vmatpush1.msra.mxu0 0.0
    %375 = vmatprep.subr.mxu0 0.0
    %376 = vmatpush1.msra.mxu0 0.0
    %377 = vmatprep.subr.mxu0 %v158
    %378 = vmatpush1.msra.mxu0 %v157
    %379 = vmatprep.subr.mxu0 %v156
    %380 = vmatpush1.msra.mxu0 %v155
    %381 = vmatprep.subr.mxu0 %v154
    %382 = vmatpush1.msra.mxu0 %v153
    %383 = vmatprep.subr.mxu0 %v152
    %384 = vmatpush1.msra.mxu0 %v151
    %385 = vmatprep.subr.mxu0 %v150
    %386 = vmatpush1.msra.mxu0 %v149
    %387 = vmatprep.subr.mxu0 %v148
    %388 = vmatpush1.msra.mxu0 %v147
    %389 = vmatprep.subr.mxu0 %v146
    %390 = vmatpush1.msra.mxu0 %v145
    %391 = vmatprep.subr.mxu0 %v144
    %392 = vmatpush1.msra.mxu0 %v143
    %393 = vmatprep.subr.mxu0 0.0
    %394 = vmatpush2.msra.mxu0 0.0
    %395 = vmatprep.subr.mxu0 0.0
    %396 = vmatpush2.msra.mxu0 0.0
    %397 = vmatprep.subr.mxu0 0.0
    %398 = vmatpush2.msra.mxu0 0.0
    %399 = vmatprep.subr.mxu0 0.0
    %400 = vmatpush2.msra.mxu0 0.0
    %401 = vmatprep.subr.mxu0 0.0
    %402 = vmatpush2.msra.mxu0 0.0
    %403 = vmatprep.subr.mxu0 0.0
    %404 = vmatpush2.msra.mxu0 0.0
    %405 = vmatprep.subr.mxu0 0.0
    %406 = vmatpush2.msra.mxu0 0.0
    %407 = vmatprep.subr.mxu0 0.0
    %408 = vmatpush2.msra.mxu0 0.0
    %409 = vmatprep.subr.mxu0 0.0
    %410 = vmatpush2.msra.mxu0 0.0
    %411 = vmatprep.subr.mxu0 0.0
    %412 = vmatpush2.msra.mxu0 0.0
    %413 = vmatprep.subr.mxu0 0.0
    %414 = vmatpush2.msra.mxu0 0.0
    %415 = vmatprep.subr.mxu0 0.0
    %416 = vmatpush2.msra.mxu0 0.0
    %417 = vmatprep.subr.mxu0 0.0
    %418 = vmatpush2.msra.mxu0 0.0
    %419 = vmatprep.subr.mxu0 0.0
    %420 = vmatpush2.msra.mxu0 0.0
    %421 = vmatprep.subr.mxu0 0.0
    %422 = vmatpush2.msra.mxu0 0.0
    %423 = vmatprep.subr.mxu0 0.0
    %424 = vmatpush2.msra.mxu0 0.0
    %425 = vmatprep.mubr.f32.mxu0 0.0
    %426 = vmatmul.mubr.f32.gmra.mxu0 %v359
    %v427 = vpop.f32.mrf.mxu0
    %v428 = vadd.f32 0.0, %v427
    %v429 = vpop.f32.mrf.mxu0
    %v430 = vadd.f32 0.0, %v429
    %431 = vdwg.mxu0
    %v433 = vrot.slane %v428, 7
    %v435 = vadd.f32 %v243, %v433
    %v436 = vxor.u32 %v435, 2147483648
    %v437 = vmul.f32 %v436, 1.442695
    %v438 = vpow.pop %v437
    %v439 = vadd.f32 %v438, 1.0
    %v440 = vrcp.pop %v439
    %v441 = vmul.f32 1.0, %v440
    %v442 = vadd.f32 %v430, %v335
    %v444 = vrot.slane %v442, 7
    %v446 = vmul.f32 %v441, %v444
    %v447 = vadd.f32 %v245, %v446
    %v448 = vtanh.pop %v447
    %v449 = vsub.f32 1.0, %v441
    %451 = vrot.lane.b32.xlu0 %v448, 64
    %v452 = vpop.permute.xlu0 %451
    %v454 = vmul.f32 %v449, %v452
    %v455 = vrot.slane %v355, 7
    %v457 = vmul.f32 %v441, %v455
    %v458 = vadd.f32 %v454, %v457
    %v460 = vrot.slane %v458, 1
    %461 = vrot.lane.b32.xlu0 %v460, 64
    %v462 = vpop.permute.xlu0 %461
    %v463 = vsel %vm247, %v462, 0
    %465 = vmatprep.subr.mxu0 0.0
    %466 = vmatpush1.msra.mxu0 0.0
    %467 = vmatprep.subr.mxu0 0.0
    %468 = vmatpush1.msra.mxu0 0.0
    %469 = vmatprep.subr.mxu0 0.0
    %470 = vmatpush1.msra.mxu0 0.0
    %471 = vmatprep.subr.mxu0 0.0
    %472 = vmatpush1.msra.mxu0 0.0
    %473 = vmatprep.subr.mxu0 0.0
    %474 = vmatpush1.msra.mxu0 0.0
    %475 = vmatprep.subr.mxu0 0.0
    %476 = vmatpush1.msra.mxu0 0.0
    %477 = vmatprep.subr.mxu0 0.0
    %478 = vmatpush1.msra.mxu0 0.0
    %479 = vmatprep.subr.mxu0 0.0
    %480 = vmatpush1.msra.mxu0 0.0
    %481 = vmatprep.subr.mxu0 %v158
    %482 = vmatpush1.msra.mxu0 %v157
    %483 = vmatprep.subr.mxu0 %v156
    %484 = vmatpush1.msra.mxu0 %v155
    %485 = vmatprep.subr.mxu0 %v154
    %486 = vmatpush1.msra.mxu0 %v153
    %487 = vmatprep.subr.mxu0 %v152
    %488 = vmatpush1.msra.mxu0 %v151
    %489 = vmatprep.subr.mxu0 %v150
    %490 = vmatpush1.msra.mxu0 %v149
    %491 = vmatprep.subr.mxu0 %v148
    %492 = vmatpush1.msra.mxu0 %v147
    %493 = vmatprep.subr.mxu0 %v146
    %494 = vmatpush1.msra.mxu0 %v145
    %495 = vmatprep.subr.mxu0 %v144
    %496 = vmatpush1.msra.mxu0 %v143
    %497 = vmatprep.subr.mxu0 0.0
    %498 = vmatpush2.msra.mxu0 0.0
    %499 = vmatprep.subr.mxu0 0.0
    %500 = vmatpush2.msra.mxu0 0.0
    %501 = vmatprep.subr.mxu0 0.0
    %502 = vmatpush2.msra.mxu0 0.0
    %503 = vmatprep.subr.mxu0 0.0
    %504 = vmatpush2.msra.mxu0 0.0
    %505 = vmatprep.subr.mxu0 0.0
    %506 = vmatpush2.msra.mxu0 0.0
    %507 = vmatprep.subr.mxu0 0.0
    %508 = vmatpush2.msra.mxu0 0.0
    %509 = vmatprep.subr.mxu0 0.0
    %510 = vmatpush2.msra.mxu0 0.0
    %511 = vmatprep.subr.mxu0 0.0
    %512 = vmatpush2.msra.mxu0 0.0
    %513 = vmatprep.subr.mxu0 0.0
    %514 = vmatpush2.msra.mxu0 0.0
    %515 = vmatprep.subr.mxu0 0.0
    %516 = vmatpush2.msra.mxu0 0.0
    %517 = vmatprep.subr.mxu0 0.0
    %518 = vmatpush2.msra.mxu0 0.0
    %519 = vmatprep.subr.mxu0 0.0
    %520 = vmatpush2.msra.mxu0 0.0
    %521 = vmatprep.subr.mxu0 0.0
    %522 = vmatpush2.msra.mxu0 0.0
    %523 = vmatprep.subr.mxu0 0.0
    %524 = vmatpush2.msra.mxu0 0.0
    %525 = vmatprep.subr.mxu0 0.0
    %526 = vmatpush2.msra.mxu0 0.0
    %527 = vmatprep.subr.mxu0 0.0
    %528 = vmatpush2.msra.mxu0 0.0
    %529 = vmatprep.mubr.f32.mxu0 0.0
    %530 = vmatmul.mubr.f32.gmra.mxu0 %v463
    %v531 = vpop.f32.mrf.mxu0
    %v532 = vadd.f32 0.0, %v531
    %v533 = vpop.f32.mrf.mxu0
    %v534 = vadd.f32 0.0, %v533
    %535 = vdwg.mxu0
    %v537 = vrot.slane %v532, 6
    %v539 = vadd.f32 %v243, %v537
    %v540 = vxor.u32 %v539, 2147483648
    %v541 = vmul.f32 %v540, 1.442695
    %v542 = vpow.pop %v541
    %v543 = vadd.f32 %v542, 1.0
    %v544 = vrcp.pop %v543
    %v545 = vmul.f32 1.0, %v544
    %v546 = vadd.f32 %v534, %v335
    %v548 = vrot.slane %v546, 6
    %v550 = vmul.f32 %v545, %v548
    %v551 = vadd.f32 %v245, %v550
    %v552 = vtanh.pop %v551
    %v553 = vsub.f32 1.0, %v545
    %555 = vrot.lane.b32.xlu0 %v552, 64
    %v556 = vpop.permute.xlu0 %555
    %v558 = vmul.f32 %v553, %v556
    %v559 = vrot.slane %v458, 7
    %v561 = vmul.f32 %v545, %v559
    %v562 = vadd.f32 %v558, %v561
    %v564 = vrot.slane %v562, 2
    %565 = vrot.lane.b32.xlu0 %v564, 64
    %v566 = vpop.permute.xlu0 %565
    %v567 = vsel %vm247, %v566, 0
    %569 = vmatprep.subr.mxu0 0.0
    %570 = vmatpush1.msra.mxu0 0.0
    %571 = vmatprep.subr.mxu0 0.0
    %572 = vmatpush1.msra.mxu0 0.0
    %573 = vmatprep.subr.mxu0 0.0
    %574 = vmatpush1.msra.mxu0 0.0
    %575 = vmatprep.subr.mxu0 0.0
    %576 = vmatpush1.msra.mxu0 0.0
    %577 = vmatprep.subr.mxu0 0.0
    %578 = vmatpush1.msra.mxu0 0.0
    %579 = vmatprep.subr.mxu0 0.0
    %580 = vmatpush1.msra.mxu0 0.0
    %581 = vmatprep.subr.mxu0 0.0
    %582 = vmatpush1.msra.mxu0 0.0
    %583 = vmatprep.subr.mxu0 0.0
    %584 = vmatpush1.msra.mxu0 0.0
    %585 = vmatprep.subr.mxu0 %v158
    %586 = vmatpush1.msra.mxu0 %v157
    %587 = vmatprep.subr.mxu0 %v156
    %588 = vmatpush1.msra.mxu0 %v155
    %589 = vmatprep.subr.mxu0 %v154
    %590 = vmatpush1.msra.mxu0 %v153
    %591 = vmatprep.subr.mxu0 %v152
    %592 = vmatpush1.msra.mxu0 %v151
    %593 = vmatprep.subr.mxu0 %v150
    %594 = vmatpush1.msra.mxu0 %v149
    %595 = vmatprep.subr.mxu0 %v148
    %596 = vmatpush1.msra.mxu0 %v147
    %597 = vmatprep.subr.mxu0 %v146
    %598 = vmatpush1.msra.mxu0 %v145
    %599 = vmatprep.subr.mxu0 %v144
    %600 = vmatpush1.msra.mxu0 %v143
    %601 = vmatprep.subr.mxu0 0.0
    %602 = vmatpush2.msra.mxu0 0.0
    %603 = vmatprep.subr.mxu0 0.0
    %604 = vmatpush2.msra.mxu0 0.0
    %605 = vmatprep.subr.mxu0 0.0
    %606 = vmatpush2.msra.mxu0 0.0
    %607 = vmatprep.subr.mxu0 0.0
    %608 = vmatpush2.msra.mxu0 0.0
    %609 = vmatprep.subr.mxu0 0.0
    %610 = vmatpush2.msra.mxu0 0.0
    %611 = vmatprep.subr.mxu0 0.0
    %612 = vmatpush2.msra.mxu0 0.0
    %613 = vmatprep.subr.mxu0 0.0
    %614 = vmatpush2.msra.mxu0 0.0
    %615 = vmatprep.subr.mxu0 0.0
    %616 = vmatpush2.msra.mxu0 0.0
    %617 = vmatprep.subr.mxu0 0.0
    %618 = vmatpush2.msra.mxu0 0.0
    %619 = vmatprep.subr.mxu0 0.0
    %620 = vmatpush2.msra.mxu0 0.0
    %621 = vmatprep.subr.mxu0 0.0
    %622 = vmatpush2.msra.mxu0 0.0
    %623 = vmatprep.subr.mxu0 0.0
    %624 = vmatpush2.msra.mxu0 0.0
    %625 = vmatprep.subr.mxu0 0.0
    %626 = vmatpush2.msra.mxu0 0.0
    %627 = vmatprep.subr.mxu0 0.0
    %628 = vmatpush2.msra.mxu0 0.0
    %629 = vmatprep.subr.mxu0 0.0
    %630 = vmatpush2.msra.mxu0 0.0
    %631 = vmatprep.subr.mxu0 0.0
    %632 = vmatpush2.msra.mxu0 0.0
    %633 = vmatprep.mubr.f32.mxu0 0.0
    %634 = vmatmul.mubr.f32.gmra.mxu0 %v567
    %v635 = vpop.f32.mrf.mxu0
    %v636 = vadd.f32 0.0, %v635
    %v637 = vpop.f32.mrf.mxu0
    %v638 = vadd.f32 0.0, %v637
    %639 = vdwg.mxu0
    %v641 = vrot.slane %v636, 5
    %v643 = vadd.f32 %v243, %v641
    %v644 = vxor.u32 %v643, 2147483648
    %v645 = vmul.f32 %v644, 1.442695
    %v646 = vpow.pop %v645
    %v647 = vadd.f32 %v646, 1.0
    %v648 = vrcp.pop %v647
    %v649 = vmul.f32 1.0, %v648
    %v650 = vadd.f32 %v638, %v335
    %v652 = vrot.slane %v650, 5
    %v654 = vmul.f32 %v649, %v652
    %v655 = vadd.f32 %v245, %v654
    %v656 = vtanh.pop %v655
    %v657 = vsub.f32 1.0, %v649
    %659 = vrot.lane.b32.xlu0 %v656, 64
    %v660 = vpop.permute.xlu0 %659
    %v662 = vmul.f32 %v657, %v660
    %v663 = vrot.slane %v562, 7
    %v665 = vmul.f32 %v649, %v663
    %v666 = vadd.f32 %v662, %v665
    %v668 = vrot.slane %v666, 3
    %669 = vrot.lane.b32.xlu0 %v668, 64
    %v670 = vpop.permute.xlu0 %669
    %v671 = vsel %vm247, %v670, 0
    %673 = vmatprep.subr.mxu0 0.0
    %674 = vmatpush1.msra.mxu0 0.0
    %675 = vmatprep.subr.mxu0 0.0
    %676 = vmatpush1.msra.mxu0 0.0
    %677 = vmatprep.subr.mxu0 0.0
    %678 = vmatpush1.msra.mxu0 0.0
    %679 = vmatprep.subr.mxu0 0.0
    %680 = vmatpush1.msra.mxu0 0.0
    %681 = vmatprep.subr.mxu0 0.0
    %682 = vmatpush1.msra.mxu0 0.0
    %683 = vmatprep.subr.mxu0 0.0
    %684 = vmatpush1.msra.mxu0 0.0
    %685 = vmatprep.subr.mxu0 0.0
    %686 = vmatpush1.msra.mxu0 0.0
    %687 = vmatprep.subr.mxu0 0.0
    %688 = vmatpush1.msra.mxu0 0.0
    %689 = vmatprep.subr.mxu0 %v158
    %690 = vmatpush1.msra.mxu0 %v157
    %691 = vmatprep.subr.mxu0 %v156
    %692 = vmatpush1.msra.mxu0 %v155
    %693 = vmatprep.subr.mxu0 %v154
    %694 = vmatpush1.msra.mxu0 %v153
    %695 = vmatprep.subr.mxu0 %v152
    %696 = vmatpush1.msra.mxu0 %v151
    %697 = vmatprep.subr.mxu0 %v150
    %698 = vmatpush1.msra.mxu0 %v149
    %699 = vmatprep.subr.mxu0 %v148
    %700 = vmatpush1.msra.mxu0 %v147
    %701 = vmatprep.subr.mxu0 %v146
    %702 = vmatpush1.msra.mxu0 %v145
    %703 = vmatprep.subr.mxu0 %v144
    %704 = vmatpush1.msra.mxu0 %v143
    %705 = vmatprep.subr.mxu0 0.0
    %706 = vmatpush2.msra.mxu0 0.0
    %707 = vmatprep.subr.mxu0 0.0
    %708 = vmatpush2.msra.mxu0 0.0
    %709 = vmatprep.subr.mxu0 0.0
    %710 = vmatpush2.msra.mxu0 0.0
    %711 = vmatprep.subr.mxu0 0.0
    %712 = vmatpush2.msra.mxu0 0.0
    %713 = vmatprep.subr.mxu0 0.0
    %714 = vmatpush2.msra.mxu0 0.0
    %715 = vmatprep.subr.mxu0 0.0
    %716 = vmatpush2.msra.mxu0 0.0
    %717 = vmatprep.subr.mxu0 0.0
    %718 = vmatpush2.msra.mxu0 0.0
    %719 = vmatprep.subr.mxu0 0.0
    %720 = vmatpush2.msra.mxu0 0.0
    %721 = vmatprep.subr.mxu0 0.0
    %722 = vmatpush2.msra.mxu0 0.0
    %723 = vmatprep.subr.mxu0 0.0
    %724 = vmatpush2.msra.mxu0 0.0
    %725 = vmatprep.subr.mxu0 0.0
    %726 = vmatpush2.msra.mxu0 0.0
    %727 = vmatprep.subr.mxu0 0.0
    %728 = vmatpush2.msra.mxu0 0.0
    %729 = vmatprep.subr.mxu0 0.0
    %730 = vmatpush2.msra.mxu0 0.0
    %731 = vmatprep.subr.mxu0 0.0
    %732 = vmatpush2.msra.mxu0 0.0
    %733 = vmatprep.subr.mxu0 0.0
    %734 = vmatpush2.msra.mxu0 0.0
    %735 = vmatprep.subr.mxu0 0.0
    %736 = vmatpush2.msra.mxu0 0.0
    %737 = vmatprep.mubr.f32.mxu0 0.0
    %738 = vmatmul.mubr.f32.gmra.mxu0 %v671
    %v739 = vpop.f32.mrf.mxu0
    %v740 = vadd.f32 0.0, %v739
    %v741 = vpop.f32.mrf.mxu0
    %v742 = vadd.f32 0.0, %v741
    %743 = vdwg.mxu0
    %v745 = vrot.slane %v740, 4
    %v747 = vadd.f32 %v243, %v745
    %v748 = vxor.u32 %v747, 2147483648
    %v749 = vmul.f32 %v748, 1.442695
    %v750 = vpow.pop %v749
    %v751 = vadd.f32 %v750, 1.0
    %v752 = vrcp.pop %v751
    %v753 = vmul.f32 1.0, %v752
    %v754 = vadd.f32 %v742, %v335
    %v756 = vrot.slane %v754, 4
    %v758 = vmul.f32 %v753, %v756
    %v759 = vadd.f32 %v245, %v758
    %v760 = vtanh.pop %v759
    %v761 = vsub.f32 1.0, %v753
    %763 = vrot.lane.b32.xlu0 %v760, 64
    %v764 = vpop.permute.xlu0 %763
    %v766 = vmul.f32 %v761, %v764
    %v767 = vrot.slane %v666, 7
    %v769 = vmul.f32 %v753, %v767
    %v770 = vadd.f32 %v766, %v769
    %v772 = vrot.slane %v770, 4
    %773 = vrot.lane.b32.xlu0 %v772, 64
    %v774 = vpop.permute.xlu0 %773
    %v775 = vsel %vm247, %v774, 0
    %777 = vmatprep.subr.mxu0 0.0
    %778 = vmatpush1.msra.mxu0 0.0
    %779 = vmatprep.subr.mxu0 0.0
    %780 = vmatpush1.msra.mxu0 0.0
    %781 = vmatprep.subr.mxu0 0.0
    %782 = vmatpush1.msra.mxu0 0.0
    %783 = vmatprep.subr.mxu0 0.0
    %784 = vmatpush1.msra.mxu0 0.0
    %785 = vmatprep.subr.mxu0 0.0
    %786 = vmatpush1.msra.mxu0 0.0
    %787 = vmatprep.subr.mxu0 0.0
    %788 = vmatpush1.msra.mxu0 0.0
    %789 = vmatprep.subr.mxu0 0.0
    %790 = vmatpush1.msra.mxu0 0.0
    %791 = vmatprep.subr.mxu0 0.0
    %792 = vmatpush1.msra.mxu0 0.0
    %793 = vmatprep.subr.mxu0 %v158
    %794 = vmatpush1.msra.mxu0 %v157
    %795 = vmatprep.subr.mxu0 %v156
    %796 = vmatpush1.msra.mxu0 %v155
    %797 = vmatprep.subr.mxu0 %v154
    %798 = vmatpush1.msra.mxu0 %v153
    %799 = vmatprep.subr.mxu0 %v152
    %800 = vmatpush1.msra.mxu0 %v151
    %801 = vmatprep.subr.mxu0 %v150
    %802 = vmatpush1.msra.mxu0 %v149
    %803 = vmatprep.subr.mxu0 %v148
    %804 = vmatpush1.msra.mxu0 %v147
    %805 = vmatprep.subr.mxu0 %v146
    %806 = vmatpush1.msra.mxu0 %v145
    %807 = vmatprep.subr.mxu0 %v144
    %808 = vmatpush1.msra.mxu0 %v143
    %809 = vmatprep.subr.mxu0 0.0
    %810 = vmatpush2.msra.mxu0 0.0
    %811 = vmatprep.subr.mxu0 0.0
    %812 = vmatpush2.msra.mxu0 0.0
    %813 = vmatprep.subr.mxu0 0.0
    %814 = vmatpush2.msra.mxu0 0.0
    %815 = vmatprep.subr.mxu0 0.0
    %816 = vmatpush2.msra.mxu0 0.0
    %817 = vmatprep.subr.mxu0 0.0
    %818 = vmatpush2.msra.mxu0 0.0
    %819 = vmatprep.subr.mxu0 0.0
    %820 = vmatpush2.msra.mxu0 0.0
    %821 = vmatprep.subr.mxu0 0.0
    %822 = vmatpush2.msra.mxu0 0.0
    %823 = vmatprep.subr.mxu0 0.0
    %824 = vmatpush2.msra.mxu0 0.0
    %825 = vmatprep.subr.mxu0 0.0
    %826 = vmatpush2.msra.mxu0 0.0
    %827 = vmatprep.subr.mxu0 0.0
    %828 = vmatpush2.msra.mxu0 0.0
    %829 = vmatprep.subr.mxu0 0.0
    %830 = vmatpush2.msra.mxu0 0.0
    %831 = vmatprep.subr.mxu0 0.0
    %832 = vmatpush2.msra.mxu0 0.0
    %833 = vmatprep.subr.mxu0 0.0
    %834 = vmatpush2.msra.mxu0 0.0
    %835 = vmatprep.subr.mxu0 0.0
    %836 = vmatpush2.msra.mxu0 0.0
    %837 = vmatprep.subr.mxu0 0.0
    %838 = vmatpush2.msra.mxu0 0.0
    %839 = vmatprep.subr.mxu0 0.0
    %840 = vmatpush2.msra.mxu0 0.0
    %841 = vmatprep.mubr.f32.mxu0 0.0
    %842 = vmatmul.mubr.f32.gmra.mxu0 %v775
    %v843 = vpop.f32.mrf.mxu0
    %v844 = vadd.f32 0.0, %v843
    %v845 = vpop.f32.mrf.mxu0
    %v846 = vadd.f32 0.0, %v845
    %847 = vdwg.mxu0
    %v849 = vrot.slane %v844, 3
    %v851 = vadd.f32 %v243, %v849
    %v852 = vxor.u32 %v851, 2147483648
    %v853 = vmul.f32 %v852, 1.442695
    %v854 = vpow.pop %v853
    %v855 = vadd.f32 %v854, 1.0
    %v856 = vrcp.pop %v855
    %v857 = vmul.f32 1.0, %v856
    %v858 = vadd.f32 %v846, %v335
    %v860 = vrot.slane %v858, 3
    %v862 = vmul.f32 %v857, %v860
    %v863 = vadd.f32 %v245, %v862
    %v864 = vtanh.pop %v863
    %v865 = vsub.f32 1.0, %v857
    %867 = vrot.lane.b32.xlu0 %v864, 64
    %v868 = vpop.permute.xlu0 %867
    %v870 = vmul.f32 %v865, %v868
    %v871 = vrot.slane %v770, 7
    %v873 = vmul.f32 %v857, %v871
    %v874 = vadd.f32 %v870, %v873
    %v876 = vrot.slane %v874, 5
    %877 = vrot.lane.b32.xlu0 %v876, 64
    %v878 = vpop.permute.xlu0 %877
    %v879 = vsel %vm247, %v878, 0
    %881 = vmatprep.subr.mxu0 0.0
    %882 = vmatpush1.msra.mxu0 0.0
    %883 = vmatprep.subr.mxu0 0.0
    %884 = vmatpush1.msra.mxu0 0.0
    %885 = vmatprep.subr.mxu0 0.0
    %886 = vmatpush1.msra.mxu0 0.0
    %887 = vmatprep.subr.mxu0 0.0
    %888 = vmatpush1.msra.mxu0 0.0
    %889 = vmatprep.subr.mxu0 0.0
    %890 = vmatpush1.msra.mxu0 0.0
    %891 = vmatprep.subr.mxu0 0.0
    %892 = vmatpush1.msra.mxu0 0.0
    %893 = vmatprep.subr.mxu0 0.0
    %894 = vmatpush1.msra.mxu0 0.0
    %895 = vmatprep.subr.mxu0 0.0
    %896 = vmatpush1.msra.mxu0 0.0
    %897 = vmatprep.subr.mxu0 %v158
    %898 = vmatpush1.msra.mxu0 %v157
    %899 = vmatprep.subr.mxu0 %v156
    %900 = vmatpush1.msra.mxu0 %v155
    %901 = vmatprep.subr.mxu0 %v154
    %902 = vmatpush1.msra.mxu0 %v153
    %903 = vmatprep.subr.mxu0 %v152
    %904 = vmatpush1.msra.mxu0 %v151
    %905 = vmatprep.subr.mxu0 %v150
    %906 = vmatpush1.msra.mxu0 %v149
    %907 = vmatprep.subr.mxu0 %v148
    %908 = vmatpush1.msra.mxu0 %v147
    %909 = vmatprep.subr.mxu0 %v146
    %910 = vmatpush1.msra.mxu0 %v145
    %911 = vmatprep.subr.mxu0 %v144
    %912 = vmatpush1.msra.mxu0 %v143
    %913 = vmatprep.subr.mxu0 0.0
    %914 = vmatpush2.msra.mxu0 0.0
    %915 = vmatprep.subr.mxu0 0.0
    %916 = vmatpush2.msra.mxu0 0.0
    %917 = vmatprep.subr.mxu0 0.0
    %918 = vmatpush2.msra.mxu0 0.0
    %919 = vmatprep.subr.mxu0 0.0
    %920 = vmatpush2.msra.mxu0 0.0
    %921 = vmatprep.subr.mxu0 0.0
    %922 = vmatpush2.msra.mxu0 0.0
    %923 = vmatprep.subr.mxu0 0.0
    %924 = vmatpush2.msra.mxu0 0.0
    %925 = vmatprep.subr.mxu0 0.0
    %926 = vmatpush2.msra.mxu0 0.0
    %927 = vmatprep.subr.mxu0 0.0
    %928 = vmatpush2.msra.mxu0 0.0
    %929 = vmatprep.subr.mxu0 0.0
    %930 = vmatpush2.msra.mxu0 0.0
    %931 = vmatprep.subr.mxu0 0.0
    %932 = vmatpush2.msra.mxu0 0.0
    %933 = vmatprep.subr.mxu0 0.0
    %934 = vmatpush2.msra.mxu0 0.0
    %935 = vmatprep.subr.mxu0 0.0
    %936 = vmatpush2.msra.mxu0 0.0
    %937 = vmatprep.subr.mxu0 0.0
    %938 = vmatpush2.msra.mxu0 0.0
    %939 = vmatprep.subr.mxu0 0.0
    %940 = vmatpush2.msra.mxu0 0.0
    %941 = vmatprep.subr.mxu0 0.0
    %942 = vmatpush2.msra.mxu0 0.0
    %943 = vmatprep.subr.mxu0 0.0
    %944 = vmatpush2.msra.mxu0 0.0
    %945 = vmatprep.mubr.f32.mxu0 0.0
    %946 = vmatmul.mubr.f32.gmra.mxu0 %v879
    %v947 = vpop.f32.mrf.mxu0
    %v948 = vadd.f32 0.0, %v947
    %v949 = vpop.f32.mrf.mxu0
    %v950 = vadd.f32 0.0, %v949
    %951 = vdwg.mxu0
    %v953 = vrot.slane %v948, 2
    %v955 = vadd.f32 %v243, %v953
    %v956 = vxor.u32 %v955, 2147483648
    %v957 = vmul.f32 %v956, 1.442695
    %v958 = vpow.pop %v957
    %v959 = vadd.f32 %v958, 1.0
    %v960 = vrcp.pop %v959
    %v961 = vmul.f32 1.0, %v960
    %v962 = vadd.f32 %v950, %v335
    %v964 = vrot.slane %v962, 2
    %v966 = vmul.f32 %v961, %v964
    %v967 = vadd.f32 %v245, %v966
    %v968 = vtanh.pop %v967
    %v969 = vsub.f32 1.0, %v961
    %971 = vrot.lane.b32.xlu0 %v968, 64
    %v972 = vpop.permute.xlu0 %971
    %v974 = vmul.f32 %v969, %v972
    %v975 = vrot.slane %v874, 7
    %v977 = vmul.f32 %v961, %v975
    %v978 = vadd.f32 %v974, %v977
    %v980 = vrot.slane %v978, 6
    %981 = vrot.lane.b32.xlu0 %v980, 64
    %v982 = vpop.permute.xlu0 %981
    %v983 = vsel %vm247, %v982, 0
    %985 = vmatprep.subr.mxu0 0.0
    %986 = vmatpush1.msra.mxu0 0.0
    %987 = vmatprep.subr.mxu0 0.0
    %988 = vmatpush1.msra.mxu0 0.0
    %989 = vmatprep.subr.mxu0 0.0
    %990 = vmatpush1.msra.mxu0 0.0
    %991 = vmatprep.subr.mxu0 0.0
    %992 = vmatpush1.msra.mxu0 0.0
    %993 = vmatprep.subr.mxu0 0.0
    %994 = vmatpush1.msra.mxu0 0.0
    %995 = vmatprep.subr.mxu0 0.0
    %996 = vmatpush1.msra.mxu0 0.0
    %997 = vmatprep.subr.mxu0 0.0
    %998 = vmatpush1.msra.mxu0 0.0
    %999 = vmatprep.subr.mxu0 0.0
    %1000 = vmatpush1.msra.mxu0 0.0
    %1001 = vmatprep.subr.mxu0 %v158
    %1002 = vmatpush1.msra.mxu0 %v157
    %1003 = vmatprep.subr.mxu0 %v156
    %1004 = vmatpush1.msra.mxu0 %v155
    %1005 = vmatprep.subr.mxu0 %v154
    %1006 = vmatpush1.msra.mxu0 %v153
    %1007 = vmatprep.subr.mxu0 %v152
    %1008 = vmatpush1.msra.mxu0 %v151
    %1009 = vmatprep.subr.mxu0 %v150
    %1010 = vmatpush1.msra.mxu0 %v149
    %1011 = vmatprep.subr.mxu0 %v148
    %1012 = vmatpush1.msra.mxu0 %v147
    %1013 = vmatprep.subr.mxu0 %v146
    %1014 = vmatpush1.msra.mxu0 %v145
    %1015 = vmatprep.subr.mxu0 %v144
    %1016 = vmatpush1.msra.mxu0 %v143
    %1017 = vmatprep.subr.mxu0 0.0
    %1018 = vmatpush2.msra.mxu0 0.0
    %1019 = vmatprep.subr.mxu0 0.0
    %1020 = vmatpush2.msra.mxu0 0.0
    %1021 = vmatprep.subr.mxu0 0.0
    %1022 = vmatpush2.msra.mxu0 0.0
    %1023 = vmatprep.subr.mxu0 0.0
    %1024 = vmatpush2.msra.mxu0 0.0
    %1025 = vmatprep.subr.mxu0 0.0
    %1026 = vmatpush2.msra.mxu0 0.0
    %1027 = vmatprep.subr.mxu0 0.0
    %1028 = vmatpush2.msra.mxu0 0.0
    %1029 = vmatprep.subr.mxu0 0.0
    %1030 = vmatpush2.msra.mxu0 0.0
    %1031 = vmatprep.subr.mxu0 0.0
    %1032 = vmatpush2.msra.mxu0 0.0
    %1033 = vmatprep.subr.mxu0 0.0
    %1034 = vmatpush2.msra.mxu0 0.0
    %1035 = vmatprep.subr.mxu0 0.0
    %1036 = vmatpush2.msra.mxu0 0.0
    %1037 = vmatprep.subr.mxu0 0.0
    %1038 = vmatpush2.msra.mxu0 0.0
    %1039 = vmatprep.subr.mxu0 0.0
    %1040 = vmatpush2.msra.mxu0 0.0
    %1041 = vmatprep.subr.mxu0 0.0
    %1042 = vmatpush2.msra.mxu0 0.0
    %1043 = vmatprep.subr.mxu0 0.0
    %1044 = vmatpush2.msra.mxu0 0.0
    %1045 = vmatprep.subr.mxu0 0.0
    %1046 = vmatpush2.msra.mxu0 0.0
    %1047 = vmatprep.subr.mxu0 0.0
    %1048 = vmatpush2.msra.mxu0 0.0
    %1049 = vmatprep.mubr.f32.mxu0 0.0
    %1050 = vmatmul.mubr.f32.gmra.mxu0 %v983
    %v1051 = vpop.f32.mrf.mxu0
    %v1052 = vadd.f32 0.0, %v1051
    %v1053 = vpop.f32.mrf.mxu0
    %v1054 = vadd.f32 0.0, %v1053
    %1055 = vdwg.mxu0
    %v1057 = vrot.slane %v1052, 1
    %v1059 = vadd.f32 %v243, %v1057
    %v1060 = vxor.u32 %v1059, 2147483648
    %v1061 = vmul.f32 %v1060, 1.442695
    %v1062 = vpow.pop %v1061
    %v1063 = vadd.f32 %v1062, 1.0
    %v1064 = vrcp.pop %v1063
    %v1065 = vmul.f32 1.0, %v1064
    %v1066 = vadd.f32 %v1054, %v335
    %v1068 = vrot.slane %v1066, 1
    %v1070 = vmul.f32 %v1065, %v1068
    %v1071 = vadd.f32 %v245, %v1070
    %v1072 = vtanh.pop %v1071
    %v1073 = vsub.f32 1.0, %v1065
    %1075 = vrot.lane.b32.xlu0 %v1072, 64
    %v1076 = vpop.permute.xlu0 %1075
    %v1078 = vmul.f32 %v1073, %v1076
    %v1079 = vrot.slane %v978, 7
    %v1081 = vmul.f32 %v1065, %v1079
    %v1082 = vadd.f32 %v1078, %v1081
    %v1083 = vsel %vm120, %v355, %v458
    %v1084 = vsel %vm122, %v1083, %v562
    %v1085 = vsel %vm124, %v1084, %v666
    %v1086 = vsel %vm126, %v1085, %v770
    %v1087 = vsel %vm128, %v1086, %v874
    %v1088 = vsel %vm130, %v1087, %v978
    %v1089 = vsel %vm132, %v1088, %v1082
    %s1090 = scalar_lea.vmem %s2, 1
    %v1091 = vld [vmem:[%s1090] sm:$0x1]
    %v1092 = vld [vmem:[%s5] sm:$0xff]
    %v1093 = vld [vmem:[%s5 + $0x8] sm:$0xff]
    %v1094 = vld [vmem:[%s5 + $0x10] sm:$0xff]
    %v1095 = vld [vmem:[%s5 + $0x18] sm:$0xff]
    %v1096 = vld [vmem:[%s5 + $0x20] sm:$0xff]
    %v1097 = vld [vmem:[%s5 + $0x28] sm:$0xff]
    %v1098 = vld [vmem:[%s5 + $0x30] sm:$0xff]
    %v1099 = vld [vmem:[%s5 + $0x38] sm:$0xff]
    %v1100 = vld [vmem:[%s5 + $0x40] sm:$0xff]
    %v1101 = vld [vmem:[%s5 + $0x48] sm:$0xff]
    %v1102 = vld [vmem:[%s5 + $0x50] sm:$0xff]
    %v1103 = vld [vmem:[%s5 + $0x58] sm:$0xff]
    %v1104 = vld [vmem:[%s5 + $0x60] sm:$0xff]
    %v1105 = vld [vmem:[%s5 + $0x68] sm:$0xff]
    %v1106 = vld [vmem:[%s5 + $0x70] sm:$0xff]
    %v1107 = vld [vmem:[%s5 + $0x78] sm:$0xff]
    %v1108 = vld [vmem:[%s5 + $0x80] sm:$0xff]
    %v1109 = vld [vmem:[%s5 + $0x88] sm:$0xff]
    %v1110 = vld [vmem:[%s5 + $0x90] sm:$0xff]
    %v1111 = vld [vmem:[%s5 + $0x98] sm:$0xff]
    %v1112 = vld [vmem:[%s5 + $0xa0] sm:$0xff]
    %v1113 = vld [vmem:[%s5 + $0xa8] sm:$0xff]
    %v1114 = vld [vmem:[%s5 + $0xb0] sm:$0xff]
    %v1115 = vld [vmem:[%s5 + $0xb8] sm:$0xff]
    %v1116 = vld [vmem:[%s5 + $0xc0] sm:$0xff]
    %v1117 = vld [vmem:[%s5 + $0xc8] sm:$0xff]
    %v1118 = vld [vmem:[%s5 + $0xd0] sm:$0xff]
    %v1119 = vld [vmem:[%s5 + $0xd8] sm:$0xff]
    %v1120 = vld [vmem:[%s5 + $0xe0] sm:$0xff]
    %v1121 = vld [vmem:[%s5 + $0xe8] sm:$0xff]
    %v1122 = vld [vmem:[%s5 + $0xf0] sm:$0xff]
    %v1123 = vld [vmem:[%s5 + $0xf8] sm:$0xff]
    %v1124 = vld [vmem:[%s6] sm:$0x3]
    %v1125 = vld [vmem:[%s6 + $0x1] sm:$0x1]
    %v1127 = vlaneseq
    %v1128 = vshrl.u32 %v1127, 7
    %v1129 = vsub.s32 0, %v1128
    %v1130 = vrot.slane %v1124, %v1129
    %v1131 = vlaneseq
    %v1132 = vshrl.u32 %v1131, 7
    %v1133 = vsub.s32 1, %v1132
    %v1134 = vrot.slane %v1124, %v1133
    %1138 = vrot.lane.b32.xlu0 %v1089, 64
    %v1139 = vpop.permute.xlu0 %1138
    %v1140 = vsel %vm247, %v1139, 0
    %1142 = vmatprep.subr.mxu0 0.0
    %1143 = vmatpush1.msra.mxu0 0.0
    %1144 = vmatprep.subr.mxu0 0.0
    %1145 = vmatpush1.msra.mxu0 0.0
    %1146 = vmatprep.subr.mxu0 0.0
    %1147 = vmatpush1.msra.mxu0 0.0
    %1148 = vmatprep.subr.mxu0 0.0
    %1149 = vmatpush1.msra.mxu0 0.0
    %1150 = vmatprep.subr.mxu0 0.0
    %1151 = vmatpush1.msra.mxu0 0.0
    %1152 = vmatprep.subr.mxu0 0.0
    %1153 = vmatpush1.msra.mxu0 0.0
    %1154 = vmatprep.subr.mxu0 0.0
    %1155 = vmatpush1.msra.mxu0 0.0
    %1156 = vmatprep.subr.mxu0 0.0
    %1157 = vmatpush1.msra.mxu0 0.0
    %1158 = vmatprep.subr.mxu0 %v1107
    %1159 = vmatpush1.msra.mxu0 %v1106
    %1160 = vmatprep.subr.mxu0 %v1105
    %1161 = vmatpush1.msra.mxu0 %v1104
    %1162 = vmatprep.subr.mxu0 %v1103
    %1163 = vmatpush1.msra.mxu0 %v1102
    %1164 = vmatprep.subr.mxu0 %v1101
    %1165 = vmatpush1.msra.mxu0 %v1100
    %1166 = vmatprep.subr.mxu0 %v1099
    %1167 = vmatpush1.msra.mxu0 %v1098
    %1168 = vmatprep.subr.mxu0 %v1097
    %1169 = vmatpush1.msra.mxu0 %v1096
    %1170 = vmatprep.subr.mxu0 %v1095
    %1171 = vmatpush1.msra.mxu0 %v1094
    %1172 = vmatprep.subr.mxu0 %v1093
    %1173 = vmatpush1.msra.mxu0 %v1092
    %1174 = vmatprep.subr.mxu0 0.0
    %1175 = vmatpush2.msra.mxu0 0.0
    %1176 = vmatprep.subr.mxu0 0.0
    %1177 = vmatpush2.msra.mxu0 0.0
    %1178 = vmatprep.subr.mxu0 0.0
    %1179 = vmatpush2.msra.mxu0 0.0
    %1180 = vmatprep.subr.mxu0 0.0
    %1181 = vmatpush2.msra.mxu0 0.0
    %1182 = vmatprep.subr.mxu0 0.0
    %1183 = vmatpush2.msra.mxu0 0.0
    %1184 = vmatprep.subr.mxu0 0.0
    %1185 = vmatpush2.msra.mxu0 0.0
    %1186 = vmatprep.subr.mxu0 0.0
    %1187 = vmatpush2.msra.mxu0 0.0
    %1188 = vmatprep.subr.mxu0 0.0
    %1189 = vmatpush2.msra.mxu0 0.0
    %1190 = vmatprep.subr.mxu0 0.0
    %1191 = vmatpush2.msra.mxu0 0.0
    %1192 = vmatprep.subr.mxu0 0.0
    %1193 = vmatpush2.msra.mxu0 0.0
    %1194 = vmatprep.subr.mxu0 0.0
    %1195 = vmatpush2.msra.mxu0 0.0
    %1196 = vmatprep.subr.mxu0 0.0
    %1197 = vmatpush2.msra.mxu0 0.0
    %1198 = vmatprep.subr.mxu0 0.0
    %1199 = vmatpush2.msra.mxu0 0.0
    %1200 = vmatprep.subr.mxu0 0.0
    %1201 = vmatpush2.msra.mxu0 0.0
    %1202 = vmatprep.subr.mxu0 0.0
    %1203 = vmatpush2.msra.mxu0 0.0
    %1204 = vmatprep.subr.mxu0 0.0
    %1205 = vmatpush2.msra.mxu0 0.0
    %1206 = vmatprep.mubr.f32.mxu0 0.0
    %1207 = vmatmul.mubr.f32.gmra.mxu0 %v1140
    %v1208 = vpop.f32.mrf.mxu0
    %v1209 = vadd.f32 %v1130, %v1208
    %v1210 = vpop.f32.mrf.mxu0
    %v1211 = vadd.f32 %v1134, %v1210
    %1212 = vdwg.mxu0
    %v1214 = vsel %vm247, %v1091, 0
    %1216 = vmatprep.subr.mxu0 0.0
    %1217 = vmatpush1.msra.mxu0 0.0
    %1218 = vmatprep.subr.mxu0 0.0
    %1219 = vmatpush1.msra.mxu0 0.0
    %1220 = vmatprep.subr.mxu0 0.0
    %1221 = vmatpush1.msra.mxu0 0.0
    %1222 = vmatprep.subr.mxu0 0.0
    %1223 = vmatpush1.msra.mxu0 0.0
    %1224 = vmatprep.subr.mxu0 0.0
    %1225 = vmatpush1.msra.mxu0 0.0
    %1226 = vmatprep.subr.mxu0 0.0
    %1227 = vmatpush1.msra.mxu0 0.0
    %1228 = vmatprep.subr.mxu0 0.0
    %1229 = vmatpush1.msra.mxu0 0.0
    %1230 = vmatprep.subr.mxu0 0.0
    %1231 = vmatpush1.msra.mxu0 0.0
    %1232 = vmatprep.subr.mxu0 %v1123
    %1233 = vmatpush1.msra.mxu0 %v1122
    %1234 = vmatprep.subr.mxu0 %v1121
    %1235 = vmatpush1.msra.mxu0 %v1120
    %1236 = vmatprep.subr.mxu0 %v1119
    %1237 = vmatpush1.msra.mxu0 %v1118
    %1238 = vmatprep.subr.mxu0 %v1117
    %1239 = vmatpush1.msra.mxu0 %v1116
    %1240 = vmatprep.subr.mxu0 %v1115
    %1241 = vmatpush1.msra.mxu0 %v1114
    %1242 = vmatprep.subr.mxu0 %v1113
    %1243 = vmatpush1.msra.mxu0 %v1112
    %1244 = vmatprep.subr.mxu0 %v1111
    %1245 = vmatpush1.msra.mxu0 %v1110
    %1246 = vmatprep.subr.mxu0 %v1109
    %1247 = vmatpush1.msra.mxu0 %v1108
    %1248 = vmatprep.subr.mxu0 0.0
    %1249 = vmatpush2.msra.mxu0 0.0
    %1250 = vmatprep.subr.mxu0 0.0
    %1251 = vmatpush2.msra.mxu0 0.0
    %1252 = vmatprep.subr.mxu0 0.0
    %1253 = vmatpush2.msra.mxu0 0.0
    %1254 = vmatprep.subr.mxu0 0.0
    %1255 = vmatpush2.msra.mxu0 0.0
    %1256 = vmatprep.subr.mxu0 0.0
    %1257 = vmatpush2.msra.mxu0 0.0
    %1258 = vmatprep.subr.mxu0 0.0
    %1259 = vmatpush2.msra.mxu0 0.0
    %1260 = vmatprep.subr.mxu0 0.0
    %1261 = vmatpush2.msra.mxu0 0.0
    %1262 = vmatprep.subr.mxu0 0.0
    %1263 = vmatpush2.msra.mxu0 0.0
    %1264 = vmatprep.subr.mxu0 0.0
    %1265 = vmatpush2.msra.mxu0 0.0
    %1266 = vmatprep.subr.mxu0 0.0
    %1267 = vmatpush2.msra.mxu0 0.0
    %1268 = vmatprep.subr.mxu0 0.0
    %1269 = vmatpush2.msra.mxu0 0.0
    %1270 = vmatprep.subr.mxu0 0.0
    %1271 = vmatpush2.msra.mxu0 0.0
    %1272 = vmatprep.subr.mxu0 0.0
    %1273 = vmatpush2.msra.mxu0 0.0
    %1274 = vmatprep.subr.mxu0 0.0
    %1275 = vmatpush2.msra.mxu0 0.0
    %1276 = vmatprep.subr.mxu0 0.0
    %1277 = vmatpush2.msra.mxu0 0.0
    %1278 = vmatprep.subr.mxu0 0.0
    %1279 = vmatpush2.msra.mxu0 0.0
    %1280 = vmatprep.mubr.f32.mxu0 0.0
    %1281 = vmatmul.mubr.f32.gmra.mxu0 %v1214
    %v1282 = vpop.f32.mrf.mxu0
    %v1283 = vadd.f32 0.0, %v1282
    %v1284 = vpop.f32.mrf.mxu0
    %v1285 = vadd.f32 0.0, %v1284
    %1286 = vdwg.mxu0
    %v1287 = vadd.f32 %v1209, %v1283
    %v1288 = vxor.u32 %v1287, 2147483648
    %v1289 = vmul.f32 %v1288, 1.442695
    %v1290 = vpow.pop %v1289
    %v1291 = vadd.f32 %v1290, 1.0
    %v1292 = vrcp.pop %v1291
    %v1293 = vmul.f32 1.0, %v1292
    %v1295 = vlaneseq
    %v1296 = vshrl.u32 %v1295, 7
    %v1297 = vsub.s32 0, %v1296
    %v1298 = vrot.slane %v1125, %v1297
    %1299 = vrot.lane.b32.xlu0 %v1298, 64
    %v1300 = vpop.permute.xlu0 %1299
    %v1302 = vadd.f32 %v1285, %v1300
    %v1303 = vmul.f32 %v1293, %v1302
    %v1304 = vadd.f32 %v1211, %v1303
    %v1305 = vtanh.pop %v1304
    %v1306 = vsub.f32 1.0, %v1293
    %1308 = vrot.lane.b32.xlu0 %v1305, 64
    %v1309 = vpop.permute.xlu0 %1308
    %v1311 = vmul.f32 %v1306, %v1309
    %v1312 = vlaneseq
    %v1313 = vshrl.u32 %v1312, 7
    %v1314 = vsub.s32 0, %v1313
    %v1315 = vrot.slane %v1091, %v1314
    %1316 = vrot.lane.b32.xlu0 %v1315, 64
    %v1317 = vpop.permute.xlu0 %1316
    %v1319 = vmul.f32 %v1293, %v1317
    %v1320 = vadd.f32 %v1311, %v1319
    %1322 = vrot.lane.b32.xlu0 %v1320, 64
    %v1323 = vpop.permute.xlu0 %1322
    %v1324 = vsel %vm247, %v1323, 0
    %1326 = vmatprep.subr.mxu0 0.0
    %1327 = vmatpush1.msra.mxu0 0.0
    %1328 = vmatprep.subr.mxu0 0.0
    %1329 = vmatpush1.msra.mxu0 0.0
    %1330 = vmatprep.subr.mxu0 0.0
    %1331 = vmatpush1.msra.mxu0 0.0
    %1332 = vmatprep.subr.mxu0 0.0
    %1333 = vmatpush1.msra.mxu0 0.0
    %1334 = vmatprep.subr.mxu0 0.0
    %1335 = vmatpush1.msra.mxu0 0.0
    %1336 = vmatprep.subr.mxu0 0.0
    %1337 = vmatpush1.msra.mxu0 0.0
    %1338 = vmatprep.subr.mxu0 0.0
    %1339 = vmatpush1.msra.mxu0 0.0
    %1340 = vmatprep.subr.mxu0 0.0
    %1341 = vmatpush1.msra.mxu0 0.0
    %1342 = vmatprep.subr.mxu0 %v1123
    %1343 = vmatpush1.msra.mxu0 %v1122
    %1344 = vmatprep.subr.mxu0 %v1121
    %1345 = vmatpush1.msra.mxu0 %v1120
    %1346 = vmatprep.subr.mxu0 %v1119
    %1347 = vmatpush1.msra.mxu0 %v1118
    %1348 = vmatprep.subr.mxu0 %v1117
    %1349 = vmatpush1.msra.mxu0 %v1116
    %1350 = vmatprep.subr.mxu0 %v1115
    %1351 = vmatpush1.msra.mxu0 %v1114
    %1352 = vmatprep.subr.mxu0 %v1113
    %1353 = vmatpush1.msra.mxu0 %v1112
    %1354 = vmatprep.subr.mxu0 %v1111
    %1355 = vmatpush1.msra.mxu0 %v1110
    %1356 = vmatprep.subr.mxu0 %v1109
    %1357 = vmatpush1.msra.mxu0 %v1108
    %1358 = vmatprep.subr.mxu0 0.0
    %1359 = vmatpush2.msra.mxu0 0.0
    %1360 = vmatprep.subr.mxu0 0.0
    %1361 = vmatpush2.msra.mxu0 0.0
    %1362 = vmatprep.subr.mxu0 0.0
    %1363 = vmatpush2.msra.mxu0 0.0
    %1364 = vmatprep.subr.mxu0 0.0
    %1365 = vmatpush2.msra.mxu0 0.0
    %1366 = vmatprep.subr.mxu0 0.0
    %1367 = vmatpush2.msra.mxu0 0.0
    %1368 = vmatprep.subr.mxu0 0.0
    %1369 = vmatpush2.msra.mxu0 0.0
    %1370 = vmatprep.subr.mxu0 0.0
    %1371 = vmatpush2.msra.mxu0 0.0
    %1372 = vmatprep.subr.mxu0 0.0
    %1373 = vmatpush2.msra.mxu0 0.0
    %1374 = vmatprep.subr.mxu0 0.0
    %1375 = vmatpush2.msra.mxu0 0.0
    %1376 = vmatprep.subr.mxu0 0.0
    %1377 = vmatpush2.msra.mxu0 0.0
    %1378 = vmatprep.subr.mxu0 0.0
    %1379 = vmatpush2.msra.mxu0 0.0
    %1380 = vmatprep.subr.mxu0 0.0
    %1381 = vmatpush2.msra.mxu0 0.0
    %1382 = vmatprep.subr.mxu0 0.0
    %1383 = vmatpush2.msra.mxu0 0.0
    %1384 = vmatprep.subr.mxu0 0.0
    %1385 = vmatpush2.msra.mxu0 0.0
    %1386 = vmatprep.subr.mxu0 0.0
    %1387 = vmatpush2.msra.mxu0 0.0
    %1388 = vmatprep.subr.mxu0 0.0
    %1389 = vmatpush2.msra.mxu0 0.0
    %1390 = vmatprep.mubr.f32.mxu0 0.0
    %1391 = vmatmul.mubr.f32.gmra.mxu0 %v1324
    %v1392 = vpop.f32.mrf.mxu0
    %v1393 = vadd.f32 0.0, %v1392
    %v1394 = vpop.f32.mrf.mxu0
    %v1395 = vadd.f32 0.0, %v1394
    %1396 = vdwg.mxu0
    %v1398 = vrot.slane %v1393, 7
    %v1400 = vadd.f32 %v1209, %v1398
    %v1401 = vxor.u32 %v1400, 2147483648
    %v1402 = vmul.f32 %v1401, 1.442695
    %v1403 = vpow.pop %v1402
    %v1404 = vadd.f32 %v1403, 1.0
    %v1405 = vrcp.pop %v1404
    %v1406 = vmul.f32 1.0, %v1405
    %v1407 = vadd.f32 %v1395, %v1300
    %v1409 = vrot.slane %v1407, 7
    %v1411 = vmul.f32 %v1406, %v1409
    %v1412 = vadd.f32 %v1211, %v1411
    %v1413 = vtanh.pop %v1412
    %v1414 = vsub.f32 1.0, %v1406
    %1416 = vrot.lane.b32.xlu0 %v1413, 64
    %v1417 = vpop.permute.xlu0 %1416
    %v1419 = vmul.f32 %v1414, %v1417
    %v1420 = vrot.slane %v1320, 7
    %v1422 = vmul.f32 %v1406, %v1420
    %v1423 = vadd.f32 %v1419, %v1422
    %v1425 = vrot.slane %v1423, 1
    %1426 = vrot.lane.b32.xlu0 %v1425, 64
    %v1427 = vpop.permute.xlu0 %1426
    %v1428 = vsel %vm247, %v1427, 0
    %1430 = vmatprep.subr.mxu0 0.0
    %1431 = vmatpush1.msra.mxu0 0.0
    %1432 = vmatprep.subr.mxu0 0.0
    %1433 = vmatpush1.msra.mxu0 0.0
    %1434 = vmatprep.subr.mxu0 0.0
    %1435 = vmatpush1.msra.mxu0 0.0
    %1436 = vmatprep.subr.mxu0 0.0
    %1437 = vmatpush1.msra.mxu0 0.0
    %1438 = vmatprep.subr.mxu0 0.0
    %1439 = vmatpush1.msra.mxu0 0.0
    %1440 = vmatprep.subr.mxu0 0.0
    %1441 = vmatpush1.msra.mxu0 0.0
    %1442 = vmatprep.subr.mxu0 0.0
    %1443 = vmatpush1.msra.mxu0 0.0
    %1444 = vmatprep.subr.mxu0 0.0
    %1445 = vmatpush1.msra.mxu0 0.0
    %1446 = vmatprep.subr.mxu0 %v1123
    %1447 = vmatpush1.msra.mxu0 %v1122
    %1448 = vmatprep.subr.mxu0 %v1121
    %1449 = vmatpush1.msra.mxu0 %v1120
    %1450 = vmatprep.subr.mxu0 %v1119
    %1451 = vmatpush1.msra.mxu0 %v1118
    %1452 = vmatprep.subr.mxu0 %v1117
    %1453 = vmatpush1.msra.mxu0 %v1116
    %1454 = vmatprep.subr.mxu0 %v1115
    %1455 = vmatpush1.msra.mxu0 %v1114
    %1456 = vmatprep.subr.mxu0 %v1113
    %1457 = vmatpush1.msra.mxu0 %v1112
    %1458 = vmatprep.subr.mxu0 %v1111
    %1459 = vmatpush1.msra.mxu0 %v1110
    %1460 = vmatprep.subr.mxu0 %v1109
    %1461 = vmatpush1.msra.mxu0 %v1108
    %1462 = vmatprep.subr.mxu0 0.0
    %1463 = vmatpush2.msra.mxu0 0.0
    %1464 = vmatprep.subr.mxu0 0.0
    %1465 = vmatpush2.msra.mxu0 0.0
    %1466 = vmatprep.subr.mxu0 0.0
    %1467 = vmatpush2.msra.mxu0 0.0
    %1468 = vmatprep.subr.mxu0 0.0
    %1469 = vmatpush2.msra.mxu0 0.0
    %1470 = vmatprep.subr.mxu0 0.0
    %1471 = vmatpush2.msra.mxu0 0.0
    %1472 = vmatprep.subr.mxu0 0.0
    %1473 = vmatpush2.msra.mxu0 0.0
    %1474 = vmatprep.subr.mxu0 0.0
    %1475 = vmatpush2.msra.mxu0 0.0
    %1476 = vmatprep.subr.mxu0 0.0
    %1477 = vmatpush2.msra.mxu0 0.0
    %1478 = vmatprep.subr.mxu0 0.0
    %1479 = vmatpush2.msra.mxu0 0.0
    %1480 = vmatprep.subr.mxu0 0.0
    %1481 = vmatpush2.msra.mxu0 0.0
    %1482 = vmatprep.subr.mxu0 0.0
    %1483 = vmatpush2.msra.mxu0 0.0
    %1484 = vmatprep.subr.mxu0 0.0
    %1485 = vmatpush2.msra.mxu0 0.0
    %1486 = vmatprep.subr.mxu0 0.0
    %1487 = vmatpush2.msra.mxu0 0.0
    %1488 = vmatprep.subr.mxu0 0.0
    %1489 = vmatpush2.msra.mxu0 0.0
    %1490 = vmatprep.subr.mxu0 0.0
    %1491 = vmatpush2.msra.mxu0 0.0
    %1492 = vmatprep.subr.mxu0 0.0
    %1493 = vmatpush2.msra.mxu0 0.0
    %1494 = vmatprep.mubr.f32.mxu0 0.0
    %1495 = vmatmul.mubr.f32.gmra.mxu0 %v1428
    %v1496 = vpop.f32.mrf.mxu0
    %v1497 = vadd.f32 0.0, %v1496
    %v1498 = vpop.f32.mrf.mxu0
    %v1499 = vadd.f32 0.0, %v1498
    %1500 = vdwg.mxu0
    %v1502 = vrot.slane %v1497, 6
    %v1504 = vadd.f32 %v1209, %v1502
    %v1505 = vxor.u32 %v1504, 2147483648
    %v1506 = vmul.f32 %v1505, 1.442695
    %v1507 = vpow.pop %v1506
    %v1508 = vadd.f32 %v1507, 1.0
    %v1509 = vrcp.pop %v1508
    %v1510 = vmul.f32 1.0, %v1509
    %v1511 = vadd.f32 %v1499, %v1300
    %v1513 = vrot.slane %v1511, 6
    %v1515 = vmul.f32 %v1510, %v1513
    %v1516 = vadd.f32 %v1211, %v1515
    %v1517 = vtanh.pop %v1516
    %v1518 = vsub.f32 1.0, %v1510
    %1520 = vrot.lane.b32.xlu0 %v1517, 64
    %v1521 = vpop.permute.xlu0 %1520
    %v1523 = vmul.f32 %v1518, %v1521
    %v1524 = vrot.slane %v1423, 7
    %v1526 = vmul.f32 %v1510, %v1524
    %v1527 = vadd.f32 %v1523, %v1526
    %v1529 = vrot.slane %v1527, 2
    %1530 = vrot.lane.b32.xlu0 %v1529, 64
    %v1531 = vpop.permute.xlu0 %1530
    %v1532 = vsel %vm247, %v1531, 0
    %1534 = vmatprep.subr.mxu0 0.0
    %1535 = vmatpush1.msra.mxu0 0.0
    %1536 = vmatprep.subr.mxu0 0.0
    %1537 = vmatpush1.msra.mxu0 0.0
    %1538 = vmatprep.subr.mxu0 0.0
    %1539 = vmatpush1.msra.mxu0 0.0
    %1540 = vmatprep.subr.mxu0 0.0
    %1541 = vmatpush1.msra.mxu0 0.0
    %1542 = vmatprep.subr.mxu0 0.0
    %1543 = vmatpush1.msra.mxu0 0.0
    %1544 = vmatprep.subr.mxu0 0.0
    %1545 = vmatpush1.msra.mxu0 0.0
    %1546 = vmatprep.subr.mxu0 0.0
    %1547 = vmatpush1.msra.mxu0 0.0
    %1548 = vmatprep.subr.mxu0 0.0
    %1549 = vmatpush1.msra.mxu0 0.0
    %1550 = vmatprep.subr.mxu0 %v1123
    %1551 = vmatpush1.msra.mxu0 %v1122
    %1552 = vmatprep.subr.mxu0 %v1121
    %1553 = vmatpush1.msra.mxu0 %v1120
    %1554 = vmatprep.subr.mxu0 %v1119
    %1555 = vmatpush1.msra.mxu0 %v1118
    %1556 = vmatprep.subr.mxu0 %v1117
    %1557 = vmatpush1.msra.mxu0 %v1116
    %1558 = vmatprep.subr.mxu0 %v1115
    %1559 = vmatpush1.msra.mxu0 %v1114
    %1560 = vmatprep.subr.mxu0 %v1113
    %1561 = vmatpush1.msra.mxu0 %v1112
    %1562 = vmatprep.subr.mxu0 %v1111
    %1563 = vmatpush1.msra.mxu0 %v1110
    %1564 = vmatprep.subr.mxu0 %v1109
    %1565 = vmatpush1.msra.mxu0 %v1108
    %1566 = vmatprep.subr.mxu0 0.0
    %1567 = vmatpush2.msra.mxu0 0.0
    %1568 = vmatprep.subr.mxu0 0.0
    %1569 = vmatpush2.msra.mxu0 0.0
    %1570 = vmatprep.subr.mxu0 0.0
    %1571 = vmatpush2.msra.mxu0 0.0
    %1572 = vmatprep.subr.mxu0 0.0
    %1573 = vmatpush2.msra.mxu0 0.0
    %1574 = vmatprep.subr.mxu0 0.0
    %1575 = vmatpush2.msra.mxu0 0.0
    %1576 = vmatprep.subr.mxu0 0.0
    %1577 = vmatpush2.msra.mxu0 0.0
    %1578 = vmatprep.subr.mxu0 0.0
    %1579 = vmatpush2.msra.mxu0 0.0
    %1580 = vmatprep.subr.mxu0 0.0
    %1581 = vmatpush2.msra.mxu0 0.0
    %1582 = vmatprep.subr.mxu0 0.0
    %1583 = vmatpush2.msra.mxu0 0.0
    %1584 = vmatprep.subr.mxu0 0.0
    %1585 = vmatpush2.msra.mxu0 0.0
    %1586 = vmatprep.subr.mxu0 0.0
    %1587 = vmatpush2.msra.mxu0 0.0
    %1588 = vmatprep.subr.mxu0 0.0
    %1589 = vmatpush2.msra.mxu0 0.0
    %1590 = vmatprep.subr.mxu0 0.0
    %1591 = vmatpush2.msra.mxu0 0.0
    %1592 = vmatprep.subr.mxu0 0.0
    %1593 = vmatpush2.msra.mxu0 0.0
    %1594 = vmatprep.subr.mxu0 0.0
    %1595 = vmatpush2.msra.mxu0 0.0
    %1596 = vmatprep.subr.mxu0 0.0
    %1597 = vmatpush2.msra.mxu0 0.0
    %1598 = vmatprep.mubr.f32.mxu0 0.0
    %1599 = vmatmul.mubr.f32.gmra.mxu0 %v1532
    %v1600 = vpop.f32.mrf.mxu0
    %v1601 = vadd.f32 0.0, %v1600
    %v1602 = vpop.f32.mrf.mxu0
    %v1603 = vadd.f32 0.0, %v1602
    %1604 = vdwg.mxu0
    %v1606 = vrot.slane %v1601, 5
    %v1608 = vadd.f32 %v1209, %v1606
    %v1609 = vxor.u32 %v1608, 2147483648
    %v1610 = vmul.f32 %v1609, 1.442695
    %v1611 = vpow.pop %v1610
    %v1612 = vadd.f32 %v1611, 1.0
    %v1613 = vrcp.pop %v1612
    %v1614 = vmul.f32 1.0, %v1613
    %v1615 = vadd.f32 %v1603, %v1300
    %v1617 = vrot.slane %v1615, 5
    %v1619 = vmul.f32 %v1614, %v1617
    %v1620 = vadd.f32 %v1211, %v1619
    %v1621 = vtanh.pop %v1620
    %v1622 = vsub.f32 1.0, %v1614
    %1624 = vrot.lane.b32.xlu0 %v1621, 64
    %v1625 = vpop.permute.xlu0 %1624
    %v1627 = vmul.f32 %v1622, %v1625
    %v1628 = vrot.slane %v1527, 7
    %v1630 = vmul.f32 %v1614, %v1628
    %v1631 = vadd.f32 %v1627, %v1630
    %v1633 = vrot.slane %v1631, 3
    %1634 = vrot.lane.b32.xlu0 %v1633, 64
    %v1635 = vpop.permute.xlu0 %1634
    %v1636 = vsel %vm247, %v1635, 0
    %1638 = vmatprep.subr.mxu0 0.0
    %1639 = vmatpush1.msra.mxu0 0.0
    %1640 = vmatprep.subr.mxu0 0.0
    %1641 = vmatpush1.msra.mxu0 0.0
    %1642 = vmatprep.subr.mxu0 0.0
    %1643 = vmatpush1.msra.mxu0 0.0
    %1644 = vmatprep.subr.mxu0 0.0
    %1645 = vmatpush1.msra.mxu0 0.0
    %1646 = vmatprep.subr.mxu0 0.0
    %1647 = vmatpush1.msra.mxu0 0.0
    %1648 = vmatprep.subr.mxu0 0.0
    %1649 = vmatpush1.msra.mxu0 0.0
    %1650 = vmatprep.subr.mxu0 0.0
    %1651 = vmatpush1.msra.mxu0 0.0
    %1652 = vmatprep.subr.mxu0 0.0
    %1653 = vmatpush1.msra.mxu0 0.0
    %1654 = vmatprep.subr.mxu0 %v1123
    %1655 = vmatpush1.msra.mxu0 %v1122
    %1656 = vmatprep.subr.mxu0 %v1121
    %1657 = vmatpush1.msra.mxu0 %v1120
    %1658 = vmatprep.subr.mxu0 %v1119
    %1659 = vmatpush1.msra.mxu0 %v1118
    %1660 = vmatprep.subr.mxu0 %v1117
    %1661 = vmatpush1.msra.mxu0 %v1116
    %1662 = vmatprep.subr.mxu0 %v1115
    %1663 = vmatpush1.msra.mxu0 %v1114
    %1664 = vmatprep.subr.mxu0 %v1113
    %1665 = vmatpush1.msra.mxu0 %v1112
    %1666 = vmatprep.subr.mxu0 %v1111
    %1667 = vmatpush1.msra.mxu0 %v1110
    %1668 = vmatprep.subr.mxu0 %v1109
    %1669 = vmatpush1.msra.mxu0 %v1108
    %1670 = vmatprep.subr.mxu0 0.0
    %1671 = vmatpush2.msra.mxu0 0.0
    %1672 = vmatprep.subr.mxu0 0.0
    %1673 = vmatpush2.msra.mxu0 0.0
    %1674 = vmatprep.subr.mxu0 0.0
    %1675 = vmatpush2.msra.mxu0 0.0
    %1676 = vmatprep.subr.mxu0 0.0
    %1677 = vmatpush2.msra.mxu0 0.0
    %1678 = vmatprep.subr.mxu0 0.0
    %1679 = vmatpush2.msra.mxu0 0.0
    %1680 = vmatprep.subr.mxu0 0.0
    %1681 = vmatpush2.msra.mxu0 0.0
    %1682 = vmatprep.subr.mxu0 0.0
    %1683 = vmatpush2.msra.mxu0 0.0
    %1684 = vmatprep.subr.mxu0 0.0
    %1685 = vmatpush2.msra.mxu0 0.0
    %1686 = vmatprep.subr.mxu0 0.0
    %1687 = vmatpush2.msra.mxu0 0.0
    %1688 = vmatprep.subr.mxu0 0.0
    %1689 = vmatpush2.msra.mxu0 0.0
    %1690 = vmatprep.subr.mxu0 0.0
    %1691 = vmatpush2.msra.mxu0 0.0
    %1692 = vmatprep.subr.mxu0 0.0
    %1693 = vmatpush2.msra.mxu0 0.0
    %1694 = vmatprep.subr.mxu0 0.0
    %1695 = vmatpush2.msra.mxu0 0.0
    %1696 = vmatprep.subr.mxu0 0.0
    %1697 = vmatpush2.msra.mxu0 0.0
    %1698 = vmatprep.subr.mxu0 0.0
    %1699 = vmatpush2.msra.mxu0 0.0
    %1700 = vmatprep.subr.mxu0 0.0
    %1701 = vmatpush2.msra.mxu0 0.0
    %1702 = vmatprep.mubr.f32.mxu0 0.0
    %1703 = vmatmul.mubr.f32.gmra.mxu0 %v1636
    %v1704 = vpop.f32.mrf.mxu0
    %v1705 = vadd.f32 0.0, %v1704
    %v1706 = vpop.f32.mrf.mxu0
    %v1707 = vadd.f32 0.0, %v1706
    %1708 = vdwg.mxu0
    %v1710 = vrot.slane %v1705, 4
    %v1712 = vadd.f32 %v1209, %v1710
    %v1713 = vxor.u32 %v1712, 2147483648
    %v1714 = vmul.f32 %v1713, 1.442695
    %v1715 = vpow.pop %v1714
    %v1716 = vadd.f32 %v1715, 1.0
    %v1717 = vrcp.pop %v1716
    %v1718 = vmul.f32 1.0, %v1717
    %v1719 = vadd.f32 %v1707, %v1300
    %v1721 = vrot.slane %v1719, 4
    %v1723 = vmul.f32 %v1718, %v1721
    %v1724 = vadd.f32 %v1211, %v1723
    %v1725 = vtanh.pop %v1724
    %v1726 = vsub.f32 1.0, %v1718
    %1728 = vrot.lane.b32.xlu0 %v1725, 64
    %v1729 = vpop.permute.xlu0 %1728
    %v1731 = vmul.f32 %v1726, %v1729
    %v1732 = vrot.slane %v1631, 7
    %v1734 = vmul.f32 %v1718, %v1732
    %v1735 = vadd.f32 %v1731, %v1734
    %v1737 = vrot.slane %v1735, 4
    %1738 = vrot.lane.b32.xlu0 %v1737, 64
    %v1739 = vpop.permute.xlu0 %1738
    %v1740 = vsel %vm247, %v1739, 0
    %1742 = vmatprep.subr.mxu0 0.0
    %1743 = vmatpush1.msra.mxu0 0.0
    %1744 = vmatprep.subr.mxu0 0.0
    %1745 = vmatpush1.msra.mxu0 0.0
    %1746 = vmatprep.subr.mxu0 0.0
    %1747 = vmatpush1.msra.mxu0 0.0
    %1748 = vmatprep.subr.mxu0 0.0
    %1749 = vmatpush1.msra.mxu0 0.0
    %1750 = vmatprep.subr.mxu0 0.0
    %1751 = vmatpush1.msra.mxu0 0.0
    %1752 = vmatprep.subr.mxu0 0.0
    %1753 = vmatpush1.msra.mxu0 0.0
    %1754 = vmatprep.subr.mxu0 0.0
    %1755 = vmatpush1.msra.mxu0 0.0
    %1756 = vmatprep.subr.mxu0 0.0
    %1757 = vmatpush1.msra.mxu0 0.0
    %1758 = vmatprep.subr.mxu0 %v1123
    %1759 = vmatpush1.msra.mxu0 %v1122
    %1760 = vmatprep.subr.mxu0 %v1121
    %1761 = vmatpush1.msra.mxu0 %v1120
    %1762 = vmatprep.subr.mxu0 %v1119
    %1763 = vmatpush1.msra.mxu0 %v1118
    %1764 = vmatprep.subr.mxu0 %v1117
    %1765 = vmatpush1.msra.mxu0 %v1116
    %1766 = vmatprep.subr.mxu0 %v1115
    %1767 = vmatpush1.msra.mxu0 %v1114
    %1768 = vmatprep.subr.mxu0 %v1113
    %1769 = vmatpush1.msra.mxu0 %v1112
    %1770 = vmatprep.subr.mxu0 %v1111
    %1771 = vmatpush1.msra.mxu0 %v1110
    %1772 = vmatprep.subr.mxu0 %v1109
    %1773 = vmatpush1.msra.mxu0 %v1108
    %1774 = vmatprep.subr.mxu0 0.0
    %1775 = vmatpush2.msra.mxu0 0.0
    %1776 = vmatprep.subr.mxu0 0.0
    %1777 = vmatpush2.msra.mxu0 0.0
    %1778 = vmatprep.subr.mxu0 0.0
    %1779 = vmatpush2.msra.mxu0 0.0
    %1780 = vmatprep.subr.mxu0 0.0
    %1781 = vmatpush2.msra.mxu0 0.0
    %1782 = vmatprep.subr.mxu0 0.0
    %1783 = vmatpush2.msra.mxu0 0.0
    %1784 = vmatprep.subr.mxu0 0.0
    %1785 = vmatpush2.msra.mxu0 0.0
    %1786 = vmatprep.subr.mxu0 0.0
    %1787 = vmatpush2.msra.mxu0 0.0
    %1788 = vmatprep.subr.mxu0 0.0
    %1789 = vmatpush2.msra.mxu0 0.0
    %1790 = vmatprep.subr.mxu0 0.0
    %1791 = vmatpush2.msra.mxu0 0.0
    %1792 = vmatprep.subr.mxu0 0.0
    %1793 = vmatpush2.msra.mxu0 0.0
    %1794 = vmatprep.subr.mxu0 0.0
    %1795 = vmatpush2.msra.mxu0 0.0
    %1796 = vmatprep.subr.mxu0 0.0
    %1797 = vmatpush2.msra.mxu0 0.0
    %1798 = vmatprep.subr.mxu0 0.0
    %1799 = vmatpush2.msra.mxu0 0.0
    %1800 = vmatprep.subr.mxu0 0.0
    %1801 = vmatpush2.msra.mxu0 0.0
    %1802 = vmatprep.subr.mxu0 0.0
    %1803 = vmatpush2.msra.mxu0 0.0
    %1804 = vmatprep.subr.mxu0 0.0
    %1805 = vmatpush2.msra.mxu0 0.0
    %1806 = vmatprep.mubr.f32.mxu0 0.0
    %1807 = vmatmul.mubr.f32.gmra.mxu0 %v1740
    %v1808 = vpop.f32.mrf.mxu0
    %v1809 = vadd.f32 0.0, %v1808
    %v1810 = vpop.f32.mrf.mxu0
    %v1811 = vadd.f32 0.0, %v1810
    %1812 = vdwg.mxu0
    %v1814 = vrot.slane %v1809, 3
    %v1816 = vadd.f32 %v1209, %v1814
    %v1817 = vxor.u32 %v1816, 2147483648
    %v1818 = vmul.f32 %v1817, 1.442695
    %v1819 = vpow.pop %v1818
    %v1820 = vadd.f32 %v1819, 1.0
    %v1821 = vrcp.pop %v1820
    %v1822 = vmul.f32 1.0, %v1821
    %v1823 = vadd.f32 %v1811, %v1300
    %v1825 = vrot.slane %v1823, 3
    %v1827 = vmul.f32 %v1822, %v1825
    %v1828 = vadd.f32 %v1211, %v1827
    %v1829 = vtanh.pop %v1828
    %v1830 = vsub.f32 1.0, %v1822
    %1832 = vrot.lane.b32.xlu0 %v1829, 64
    %v1833 = vpop.permute.xlu0 %1832
    %v1835 = vmul.f32 %v1830, %v1833
    %v1836 = vrot.slane %v1735, 7
    %v1838 = vmul.f32 %v1822, %v1836
    %v1839 = vadd.f32 %v1835, %v1838
    %v1841 = vrot.slane %v1839, 5
    %1842 = vrot.lane.b32.xlu0 %v1841, 64
    %v1843 = vpop.permute.xlu0 %1842
    %v1844 = vsel %vm247, %v1843, 0
    %1846 = vmatprep.subr.mxu0 0.0
    %1847 = vmatpush1.msra.mxu0 0.0
    %1848 = vmatprep.subr.mxu0 0.0
    %1849 = vmatpush1.msra.mxu0 0.0
    %1850 = vmatprep.subr.mxu0 0.0
    %1851 = vmatpush1.msra.mxu0 0.0
    %1852 = vmatprep.subr.mxu0 0.0
    %1853 = vmatpush1.msra.mxu0 0.0
    %1854 = vmatprep.subr.mxu0 0.0
    %1855 = vmatpush1.msra.mxu0 0.0
    %1856 = vmatprep.subr.mxu0 0.0
    %1857 = vmatpush1.msra.mxu0 0.0
    %1858 = vmatprep.subr.mxu0 0.0
    %1859 = vmatpush1.msra.mxu0 0.0
    %1860 = vmatprep.subr.mxu0 0.0
    %1861 = vmatpush1.msra.mxu0 0.0
    %1862 = vmatprep.subr.mxu0 %v1123
    %1863 = vmatpush1.msra.mxu0 %v1122
    %1864 = vmatprep.subr.mxu0 %v1121
    %1865 = vmatpush1.msra.mxu0 %v1120
    %1866 = vmatprep.subr.mxu0 %v1119
    %1867 = vmatpush1.msra.mxu0 %v1118
    %1868 = vmatprep.subr.mxu0 %v1117
    %1869 = vmatpush1.msra.mxu0 %v1116
    %1870 = vmatprep.subr.mxu0 %v1115
    %1871 = vmatpush1.msra.mxu0 %v1114
    %1872 = vmatprep.subr.mxu0 %v1113
    %1873 = vmatpush1.msra.mxu0 %v1112
    %1874 = vmatprep.subr.mxu0 %v1111
    %1875 = vmatpush1.msra.mxu0 %v1110
    %1876 = vmatprep.subr.mxu0 %v1109
    %1877 = vmatpush1.msra.mxu0 %v1108
    %1878 = vmatprep.subr.mxu0 0.0
    %1879 = vmatpush2.msra.mxu0 0.0
    %1880 = vmatprep.subr.mxu0 0.0
    %1881 = vmatpush2.msra.mxu0 0.0
    %1882 = vmatprep.subr.mxu0 0.0
    %1883 = vmatpush2.msra.mxu0 0.0
    %1884 = vmatprep.subr.mxu0 0.0
    %1885 = vmatpush2.msra.mxu0 0.0
    %1886 = vmatprep.subr.mxu0 0.0
    %1887 = vmatpush2.msra.mxu0 0.0
    %1888 = vmatprep.subr.mxu0 0.0
    %1889 = vmatpush2.msra.mxu0 0.0
    %1890 = vmatprep.subr.mxu0 0.0
    %1891 = vmatpush2.msra.mxu0 0.0
    %1892 = vmatprep.subr.mxu0 0.0
    %1893 = vmatpush2.msra.mxu0 0.0
    %1894 = vmatprep.subr.mxu0 0.0
    %1895 = vmatpush2.msra.mxu0 0.0
    %1896 = vmatprep.subr.mxu0 0.0
    %1897 = vmatpush2.msra.mxu0 0.0
    %1898 = vmatprep.subr.mxu0 0.0
    %1899 = vmatpush2.msra.mxu0 0.0
    %1900 = vmatprep.subr.mxu0 0.0
    %1901 = vmatpush2.msra.mxu0 0.0
    %1902 = vmatprep.subr.mxu0 0.0
    %1903 = vmatpush2.msra.mxu0 0.0
    %1904 = vmatprep.subr.mxu0 0.0
    %1905 = vmatpush2.msra.mxu0 0.0
    %1906 = vmatprep.subr.mxu0 0.0
    %1907 = vmatpush2.msra.mxu0 0.0
    %1908 = vmatprep.subr.mxu0 0.0
    %1909 = vmatpush2.msra.mxu0 0.0
    %1910 = vmatprep.mubr.f32.mxu0 0.0
    %1911 = vmatmul.mubr.f32.gmra.mxu0 %v1844
    %v1912 = vpop.f32.mrf.mxu0
    %v1913 = vadd.f32 0.0, %v1912
    %v1914 = vpop.f32.mrf.mxu0
    %v1915 = vadd.f32 0.0, %v1914
    %1916 = vdwg.mxu0
    %v1918 = vrot.slane %v1913, 2
    %v1920 = vadd.f32 %v1209, %v1918
    %v1921 = vxor.u32 %v1920, 2147483648
    %v1922 = vmul.f32 %v1921, 1.442695
    %v1923 = vpow.pop %v1922
    %v1924 = vadd.f32 %v1923, 1.0
    %v1925 = vrcp.pop %v1924
    %v1926 = vmul.f32 1.0, %v1925
    %v1927 = vadd.f32 %v1915, %v1300
    %v1929 = vrot.slane %v1927, 2
    %v1931 = vmul.f32 %v1926, %v1929
    %v1932 = vadd.f32 %v1211, %v1931
    %v1933 = vtanh.pop %v1932
    %v1934 = vsub.f32 1.0, %v1926
    %1936 = vrot.lane.b32.xlu0 %v1933, 64
    %v1937 = vpop.permute.xlu0 %1936
    %v1939 = vmul.f32 %v1934, %v1937
    %v1940 = vrot.slane %v1839, 7
    %v1942 = vmul.f32 %v1926, %v1940
    %v1943 = vadd.f32 %v1939, %v1942
    %v1945 = vrot.slane %v1943, 6
    %1946 = vrot.lane.b32.xlu0 %v1945, 64
    %v1947 = vpop.permute.xlu0 %1946
    %v1948 = vsel %vm247, %v1947, 0
    %1950 = vmatprep.subr.mxu0 0.0
    %1951 = vmatpush1.msra.mxu0 0.0
    %1952 = vmatprep.subr.mxu0 0.0
    %1953 = vmatpush1.msra.mxu0 0.0
    %1954 = vmatprep.subr.mxu0 0.0
    %1955 = vmatpush1.msra.mxu0 0.0
    %1956 = vmatprep.subr.mxu0 0.0
    %1957 = vmatpush1.msra.mxu0 0.0
    %1958 = vmatprep.subr.mxu0 0.0
    %1959 = vmatpush1.msra.mxu0 0.0
    %1960 = vmatprep.subr.mxu0 0.0
    %1961 = vmatpush1.msra.mxu0 0.0
    %1962 = vmatprep.subr.mxu0 0.0
    %1963 = vmatpush1.msra.mxu0 0.0
    %1964 = vmatprep.subr.mxu0 0.0
    %1965 = vmatpush1.msra.mxu0 0.0
    %1966 = vmatprep.subr.mxu0 %v1123
    %1967 = vmatpush1.msra.mxu0 %v1122
    %1968 = vmatprep.subr.mxu0 %v1121
    %1969 = vmatpush1.msra.mxu0 %v1120
    %1970 = vmatprep.subr.mxu0 %v1119
    %1971 = vmatpush1.msra.mxu0 %v1118
    %1972 = vmatprep.subr.mxu0 %v1117
    %1973 = vmatpush1.msra.mxu0 %v1116
    %1974 = vmatprep.subr.mxu0 %v1115
    %1975 = vmatpush1.msra.mxu0 %v1114
    %1976 = vmatprep.subr.mxu0 %v1113
    %1977 = vmatpush1.msra.mxu0 %v1112
    %1978 = vmatprep.subr.mxu0 %v1111
    %1979 = vmatpush1.msra.mxu0 %v1110
    %1980 = vmatprep.subr.mxu0 %v1109
    %1981 = vmatpush1.msra.mxu0 %v1108
    %1982 = vmatprep.subr.mxu0 0.0
    %1983 = vmatpush2.msra.mxu0 0.0
    %1984 = vmatprep.subr.mxu0 0.0
    %1985 = vmatpush2.msra.mxu0 0.0
    %1986 = vmatprep.subr.mxu0 0.0
    %1987 = vmatpush2.msra.mxu0 0.0
    %1988 = vmatprep.subr.mxu0 0.0
    %1989 = vmatpush2.msra.mxu0 0.0
    %1990 = vmatprep.subr.mxu0 0.0
    %1991 = vmatpush2.msra.mxu0 0.0
    %1992 = vmatprep.subr.mxu0 0.0
    %1993 = vmatpush2.msra.mxu0 0.0
    %1994 = vmatprep.subr.mxu0 0.0
    %1995 = vmatpush2.msra.mxu0 0.0
    %1996 = vmatprep.subr.mxu0 0.0
    %1997 = vmatpush2.msra.mxu0 0.0
    %1998 = vmatprep.subr.mxu0 0.0
    %1999 = vmatpush2.msra.mxu0 0.0
    %2000 = vmatprep.subr.mxu0 0.0
    %2001 = vmatpush2.msra.mxu0 0.0
    %2002 = vmatprep.subr.mxu0 0.0
    %2003 = vmatpush2.msra.mxu0 0.0
    %2004 = vmatprep.subr.mxu0 0.0
    %2005 = vmatpush2.msra.mxu0 0.0
    %2006 = vmatprep.subr.mxu0 0.0
    %2007 = vmatpush2.msra.mxu0 0.0
    %2008 = vmatprep.subr.mxu0 0.0
    %2009 = vmatpush2.msra.mxu0 0.0
    %2010 = vmatprep.subr.mxu0 0.0
    %2011 = vmatpush2.msra.mxu0 0.0
    %2012 = vmatprep.subr.mxu0 0.0
    %2013 = vmatpush2.msra.mxu0 0.0
    %2014 = vmatprep.mubr.f32.mxu0 0.0
    %2015 = vmatmul.mubr.f32.gmra.mxu0 %v1948
    %v2016 = vpop.f32.mrf.mxu0
    %v2017 = vadd.f32 0.0, %v2016
    %v2018 = vpop.f32.mrf.mxu0
    %v2019 = vadd.f32 0.0, %v2018
    %2020 = vdwg.mxu0
    %v2022 = vrot.slane %v2017, 1
    %v2024 = vadd.f32 %v1209, %v2022
    %v2025 = vxor.u32 %v2024, 2147483648
    %v2026 = vmul.f32 %v2025, 1.442695
    %v2027 = vpow.pop %v2026
    %v2028 = vadd.f32 %v2027, 1.0
    %v2029 = vrcp.pop %v2028
    %v2030 = vmul.f32 1.0, %v2029
    %v2031 = vadd.f32 %v2019, %v1300
    %v2033 = vrot.slane %v2031, 1
    %v2035 = vmul.f32 %v2030, %v2033
    %v2036 = vadd.f32 %v1211, %v2035
    %v2037 = vtanh.pop %v2036
    %v2038 = vsub.f32 1.0, %v2030
    %2040 = vrot.lane.b32.xlu0 %v2037, 64
    %v2041 = vpop.permute.xlu0 %2040
    %v2043 = vmul.f32 %v2038, %v2041
    %v2044 = vrot.slane %v1943, 7
    %v2046 = vmul.f32 %v2030, %v2044
    %v2047 = vadd.f32 %v2043, %v2046
    %v2048 = vsel %vm120, %v1320, %v1423
    %v2049 = vsel %vm122, %v2048, %v1527
    %v2050 = vsel %vm124, %v2049, %v1631
    %v2051 = vsel %vm126, %v2050, %v1735
    %v2052 = vsel %vm128, %v2051, %v1839
    %v2053 = vsel %vm130, %v2052, %v1943
    %v2054 = vsel %vm132, %v2053, %v2047
    %2056 = vrot.lane.b32.xlu0 %v2054, 64
    %v2057 = vpop.permute.xlu0 %2056
    %2059 = vst.msk [vmem:[#allocation5] sm:$0xff] %vm247, %v2057
    %2061 = vrot.lane.b32.xlu0 %v1082, 64
    %v2062 = vpop.permute.xlu0 %2061
    %vm2064 = vcmask 523271
    %2065 = vst.msk [vmem:[#allocation6 - $0x7] sm:$0x80] %vm2064, %v2062
    %2067 = vrot.lane.b32.xlu0 %v2047, 64
    %v2068 = vpop.permute.xlu0 %2067
    %s2070 = scalar_lea.vmem [#allocation6], 1
    %2071 = vst.msk [vmem:[%s2070 - $0x7] sm:$0x80] %vm2064, %v2068
    // Predicated region
    $region34: #{encode_sequence.1} parent=1 // pred_check
      _
    $region35: #{encode_sequence.1} parent=1 // pred_check_branch
      %2073 = sbr.rel (0) target = $region37
    $region36: #{encode_sequence.1} parent=1 // pred_region
      %s2075 = ssub.s32 128, 128
      %2076 = vsyncadd [#allocation3], %s2075
      %s2078 = sshll.u32 [#allocation5], 4
      %s2079 = int_to_ptr.vmem [resolvable:$true] %s2078
      %2081 = dma.vmem_to_hbm [thread:$0]  %s2079, 128, %s7, [#allocation3]
    $region37: #{encode_sequence.1} parent=1 // pred_fallthru
      _
    // Predicated region
    $region38: #{encode_sequence.1} parent=1 // pred_check
      _
    $region39: #{encode_sequence.1} parent=1 // pred_check_branch
      %2083 = sbr.rel (0) target = $region41
    $region40: #{encode_sequence.1} parent=1 // pred_region
      %s2085 = ssub.s32 32, 32
      %2086 = vsyncadd [#allocation7], %s2085
      %s2087 = sshll.u32 [#allocation6], 4
      %s2088 = int_to_ptr.vmem [resolvable:$true] %s2087
      %2093 = dma.vmem_to_hbm [thread:$0]  %s2088, 32, %s8, [#allocation7], 16, 16, 1
    $region41: #{encode_sequence.1} parent=1 // pred_fallthru
      _
    // Predicated region
    $region42: #{encode_sequence.1} parent=1 // pred_check
      _
    $region43: #{encode_sequence.1} parent=1 // pred_check_branch
      %2095 = sbr.rel (0) target = $region45
    $region44: #{encode_sequence.1} parent=1 // pred_region
      %2096 = dma.done [#allocation3], 128
    $region45: #{encode_sequence.1} parent=1 // pred_fallthru
      _
    // Predicated region
    $region46: #{encode_sequence.1} parent=1 // pred_check
      _
    $region47: #{encode_sequence.1} parent=1 // pred_check_branch
      %2098 = sbr.rel (0) target = $region49
    $region48: #{encode_sequence.1} parent=1 // pred_region
      %2099 = dma.done [#allocation7], 32
    $region49: #{encode_sequence.1} parent=1 // pred_fallthru
      _
    %2100 = vsyncpa [#allocation3], 1
    %2101 = vsyncpa [#allocation7], 1
    %2102 = vsyncpa [#allocation4], 1

</llo_original>
